<compile_context>
chip_gen: v7x
topology: tpu7x:2x2x1
jax: 0.10.0
libtpu: 0.0.40
codegen_flags: <defaults>
</compile_context>

<pallas_src>
import functools

import jax
import jax.numpy as jnp
from jax.experimental import pallas as pl
from jax.experimental.pallas import tpu as pltpu


# --------------------------------------------------------------------------
# Small static helpers (run outside jit / at trace time on static shapes).
# --------------------------------------------------------------------------
def _round_up(x: int, m: int) -> int:
    return ((x + m - 1) // m) * m


def _bilinear_matrix(out_size: int, in_size: int) -> jnp.ndarray:
    """R[out, in] for 1-D bilinear resize, align_corners=True (float32)."""
    if out_size == 1:
        src = jnp.zeros((1,), dtype=jnp.float32)
    else:
        src = jnp.arange(out_size, dtype=jnp.float32) * (
            (in_size - 1) / (out_size - 1))
    i0 = jnp.clip(jnp.floor(src).astype(jnp.int32), 0, in_size - 1)
    i1 = jnp.clip(i0 + 1, 0, in_size - 1)
    frac = src - i0.astype(jnp.float32)
    oh0 = jax.nn.one_hot(i0, in_size, dtype=jnp.float32)
    oh1 = jax.nn.one_hot(i1, in_size, dtype=jnp.float32)
    return (1.0 - frac)[:, None] * oh0 + frac[:, None] * oh1


def _vmem_plan():
    """(tile_budget_bytes, vmem_limit_bytes), generation-aware."""
    try:
        cap = pltpu.get_tpu_info().vmem_capacity_bytes
    except Exception:
        cap = 64 * 1024 * 1024  # conservative fallback (v7x per-TC size)
    if cap <= 80 * 1024 * 1024:          # v7x: 64 MiB per TensorCore
        return 40 * 1024 * 1024, 48 * 1024 * 1024
    return 64 * 1024 * 1024, 96 * 1024 * 1024   # v5e / v6e: 128 MiB VMEM


def _pick_tile(total: int, align: int, fits) -> int:
    """Full extent if it fits, else the largest aligned divisor that fits."""
    if fits(total):
        return total
    cands = [t for t in range(align, total, align) if total % t == 0]
    for t in sorted(cands, reverse=True):
        if fits(t):
            return t
    return cands[0] if cands else total   # best effort; shapes this small fit anyway


def _pick_oh_tile(oh: int, fits, want_split: bool) -> int:
    """OH tile: multiple of 8, fits the budget; split >=2 ways when N == 1."""
    toh = _round_up(oh, 8)
    while toh > 8 and not fits(toh):
        toh = _round_up((toh + 1) // 2, 8)
    if want_split and toh >= _round_up(oh, 8) and toh > 8:
        toh = _round_up((toh + 1) // 2, 8)   # give v7x's 2nd TensorCore work
    return toh


# --------------------------------------------------------------------------
# Kernels
# --------------------------------------------------------------------------
def _conv1x1_kernel(x_ref, w_ref, b_ref, y_ref):
    # x_ref: (1, C, THW)  w_ref: (R, C)  b_ref: (R, 1)  y_ref: (1, R, THW)
    y = jnp.dot(w_ref[...], x_ref[0], preferred_element_type=jnp.float32)
    y_ref[0] = (y + b_ref[...]).astype(y_ref.dtype)       # bias before resize,
    #                                                       exactly like Conv2d


def _w_resize_kernel(y_ref, rwt_ref, t_ref):
    # y_ref: (1, TRH, W)  rwt_ref: (W, OW)  t_ref: (1, TRH, OW)
    # Streaming M-dim is R*H rows (not R), per review.
    t_ref[0] = jnp.dot(y_ref[0], rwt_ref[...],
                       preferred_element_type=jnp.float32).astype(t_ref.dtype)


def _make_h_resize_kernel(r: int, h: int):
    def kernel(t_ref, rh_ref, o_ref):
        # t_ref: (1, R*H, OW)  rh_ref: (TOH, H)  o_ref: (1, R, TOH, OW)
        rh = rh_ref[...]                       # load once, reuse for all R channels
        for rr in range(r):                    # static unroll (R is small)
            o_ref[0, rr] = jnp.dot(
                rh, t_ref[0, pl.ds(rr * h, h), :],
                preferred_element_type=jnp.float32).astype(o_ref.dtype)
    return kernel


# --------------------------------------------------------------------------
# Forward
# --------------------------------------------------------------------------
@functools.partial(
    jax.jit,
    static_argnames=("img_shape", "scale", "training", "use_bf16",
                     "thw", "trh", "toh", "vmem_limit"))
def _pse_head_forward_impl(x, weight, bias, *, img_shape, scale, training,
                           use_bf16, thw, trh, toh, vmem_limit):
    n, c, h, w = x.shape
    r = weight.shape[0]
    oh, ow = (img_shape if training
              else (img_shape[0] // scale, img_shape[1] // scale))
    hw = h * w
    oh_pad = _round_up(oh, toh)

    cdtype = jnp.bfloat16 if use_bf16 else jnp.float32

    def _cparams(sem):
        return pltpu.CompilerParams(dimension_semantics=sem,
                                    vmem_limit_bytes=vmem_limit)

    # Tiny separable interpolation matrices (static shapes -> constant under jit).
    rh = _bilinear_matrix(oh, h)                                   # (OH, H)
    if oh_pad != oh:
        rh = jnp.concatenate(
            [rh, jnp.zeros((oh_pad - oh, h), jnp.float32)], axis=0)
    rwt = _bilinear_matrix(ow, w).T                                # (W, OW)

    x3 = x.reshape(n, c, hw).astype(cdtype)          # free row-major view
    w2 = weight.astype(cdtype)                       # (R, C)
    b2 = bias.astype(jnp.float32).reshape(r, 1)      # (R, 1)

    # ---- K1: 1x1 conv (+bias), once per batch element --------------------
    y = pl.pallas_call(
        _conv1x1_kernel,
        out_shape=jax.ShapeDtypeStruct((n, r, hw), cdtype),
        grid_spec=pltpu.PrefetchScalarGridSpec(
            num_scalar_prefetch=0,
            grid=(n, hw // thw),
            in_specs=[
                pl.BlockSpec((1, c, thw), lambda i, k: (i, 0, k)),
                pl.BlockSpec((r, c), lambda i, k: (0, 0)),
                pl.BlockSpec((r, 1), lambda i, k: (0, 0)),
            ],
            out_specs=pl.BlockSpec((1, r, thw), lambda i, k: (i, 0, k)),
        ),
        compiler_params=_cparams(("parallel", "parallel")),
    )(x3, w2, b2)

    # ---- K2: bilinear resize along W --------------------------------------
    y4 = y.reshape(n, r * h, w)                      # free row-major view
    t = pl.pallas_call(
        _w_resize_kernel,
        out_shape=jax.ShapeDtypeStruct((n, r * h, ow), cdtype),
        grid_spec=pltpu.PrefetchScalarGridSpec(
            num_scalar_prefetch=0,
            grid=(n, (r * h) // trh),
            in_specs=[
                pl.BlockSpec((1, trh, w), lambda i, k: (i, k, 0)),
                pl.BlockSpec((w, ow), lambda i, k: (0, 0)),
            ],
            out_specs=pl.BlockSpec((1, trh, ow), lambda i, k: (i, k, 0)),
        ),
        compiler_params=_cparams(("parallel", "parallel")),
    )(y4, rwt.astype(cdtype))

    # ---- K3: bilinear resize along H (final output) -----------------------
    # TODO(synk): if xprof shows exposed DMA between the short per-tile
    # matmuls, raise the t/rh specs to pipeline_mode=pl.Buffered(3).
    out = pl.pallas_call(
        _make_h_resize_kernel(r, h),
        out_shape=jax.ShapeDtypeStruct((n, r, oh_pad, ow), jnp.float32),
        grid_spec=pltpu.PrefetchScalarGridSpec(
            num_scalar_prefetch=0,
            grid=(n, oh_pad // toh),
            in_specs=[
                pl.BlockSpec((1, r * h, ow), lambda i, j: (i, 0, 0)),
                pl.BlockSpec((toh, h), lambda i, j: (j, 0)),
            ],
            out_specs=pl.BlockSpec((1, r, toh, ow), lambda i, j: (i, 0, j, 0)),
        ),
        compiler_params=_cparams(("parallel", "parallel")),
    )(t, rh.astype(cdtype))

    return out[:, :, :oh, :] if oh_pad != oh else out


def pse_head_forward(x, weight, bias, img_shape=(640, 640), scale=1,
                     training=False, use_bf16=False):
    """x: [N, C, H, W] f32;  weight: [R, C];  bias: [R]  ->  [N, R, OH, OW] f32."""
    n, c, h, w = x.shape
    r = weight.shape[0]
    img_shape = tuple(int(s) for s in img_shape)
    oh, ow = (img_shape if training
              else (img_shape[0] // scale, img_shape[1] // scale))
    hw = h * w
    esz = 2 if use_bf16 else 4
    budget, vmem_limit = _vmem_plan()

    # Tile sizes (static): double-buffer only the grid-varying blocks; the
    # grid-invariant weight / bias / interp blocks are counted once.
    thw = _pick_tile(
        hw, 128,
        lambda t: 2 * (c * t + r * t) * esz + r * (c + 1) * 4 <= budget)
    trh = _pick_tile(
        r * h, 8,
        lambda t: (2 * (t * w + t * ow) + w * ow) * esz <= budget)
    toh = _pick_oh_tile(
        oh,
        lambda t: 2 * (r * h * ow + t * h) * esz + 2 * r * t * ow * 4 <= budget,
        want_split=(n == 1))

    return _pse_head_forward_impl(
        x, weight, bias, img_shape=img_shape, scale=scale, training=training,
        use_bf16=use_bf16, thw=thw, trh=trh, toh=toh, vmem_limit=vmem_limit)


# --------------------------------------------------------------------------
# Pure-JAX reference (eval-mode PSEHead forward) and self-test.
# --------------------------------------------------------------------------
def _reference_forward(x, weight, bias, img_shape=(32, 32), scale=1):
    oh, ow = img_shape[0] // scale, img_shape[1] // scale
    _, _, h, w = x.shape
    y = jnp.einsum('rc,nchw->nrhw', weight, x) + bias[None, :, None, None]
    rh = _bilinear_matrix(oh, h)
    rw = _bilinear_matrix(ow, w)
    t = jnp.einsum('ah,nrhw->nraw', rh, y)
    return jnp.einsum('nraw,bw->nrab', t, rw)


if __name__ == "__main__":
    key = jax.random.PRNGKey(0)
    k_x, k_w, k_b = jax.random.split(key, 3)

    N, C, H, W = 2, 4, 16, 16
    RESULT_NUM = 6
    IMG_SHAPE = (32, 32)
    SCALE = 1

    x = jax.random.normal(k_x, (N, C, H, W), dtype=jnp.float32)
    # Deterministic synthetic parameters for Conv2d(in_channels, result_num, k=1).
    weight = jax.random.normal(k_w, (RESULT_NUM, C), dtype=jnp.float32) * 0.1
    bias = jax.random.normal(k_b, (RESULT_NUM,), dtype=jnp.float32) * 0.01

    out = pse_head_forward(x, weight, bias, img_shape=IMG_SHAPE, scale=SCALE)
    out = jax.block_until_ready(out)

    ref = _reference_forward(x, weight, bias, img_shape=IMG_SHAPE, scale=SCALE)
    assert out.shape == (N, RESULT_NUM, IMG_SHAPE[0] // SCALE, IMG_SHAPE[1] // SCALE)
    assert jnp.allclose(out, ref, atol=1e-4, rtol=1e-4), "mismatch vs reference"

    print("KERNEL_OK")
</pallas_src>

<mosaic_0001>
module attributes {stable_mosaic.version = 11 : i64} {
  func.func @kernel(%arg0: i32, %arg1: i32, %arg2: memref<1x96x32xf32, #tpu.memory_space<vmem>>, %arg3: memref<32x16xf32, #tpu.memory_space<vmem>>, %arg4: memref<1x6x32x32xf32, #tpu.memory_space<vmem>>) attributes {dimension_semantics = [#tpu.dimension_semantics<parallel>, #tpu.dimension_semantics<parallel>], iteration_bounds = array<i64: 2, 1>, scalar_prefetch = 0 : i64, scratch_operands = 0 : i64, tpu.core_type = #tpu.core_type<tc>, window_params = [{transform_indices = @transform_0, window_bounds = array<i64: 1, 96, 32>}, {transform_indices = @transform_1, window_bounds = array<i64: 32, 16>}, {transform_indices = @transform_2, window_bounds = array<i64: 1, 6, 32, 32>}]} {
    %c0 = arith.constant 0 : index
    %c0_0 = arith.constant 0 : index
    %0 = vector.load %arg3[%c0, %c0_0] : memref<32x16xf32, #tpu.memory_space<vmem>>, vector<32x16xf32>
    %c0_1 = arith.constant 0 : index
    %c0_2 = arith.constant 0 : index
    %c0_3 = arith.constant 0 : index
    %1 = vector.load %arg2[%c0_1, %c0_2, %c0_3] : memref<1x96x32xf32, #tpu.memory_space<vmem>>, vector<1x16x32xf32>
    %2 = vector.shape_cast %1 : vector<1x16x32xf32> to vector<16x32xf32>
    %cst = arith.constant dense<0.000000e+00> : vector<32x32xf32>
    %3 = tpu.matmul %0, %2, %cst {dimension_numbers = #tpu.dot_dimension_numbers<[1], [0], [0], [1], [0, 0, 1, 1], [], []>} : vector<32x16xf32>, vector<16x32xf32>, vector<32x32xf32> -> vector<32x32xf32>
    %c0_4 = arith.constant 0 : index
    %c0_5 = arith.constant 0 : index
    %c0_6 = arith.constant 0 : index
    %c0_7 = arith.constant 0 : index
    %4 = vector.load %arg4[%c0_4, %c0_5, %c0_6, %c0_7] : memref<1x6x32x32xf32, #tpu.memory_space<vmem>>, vector<1x1x32x32xf32>
    %5 = vector.shape_cast %4 : vector<1x1x32x32xf32> to vector<32x32xf32>
    %6 = vector.shape_cast %3 : vector<32x32xf32> to vector<1x1x32x32xf32>
    tpu.vector_store %arg4[%c0_4, %c0_5, %c0_6, %c0_7], %6 {strides = array<i32>} : memref<1x6x32x32xf32, #tpu.memory_space<vmem>>, vector<1x1x32x32xf32>,
    %c0_8 = arith.constant 0 : index
    %c16 = arith.constant 16 : index
    %c0_9 = arith.constant 0 : index
    %7 = vector.load %arg2[%c0_8, %c16, %c0_9] : memref<1x96x32xf32, #tpu.memory_space<vmem>>, vector<1x16x32xf32>
    %8 = vector.shape_cast %7 : vector<1x16x32xf32> to vector<16x32xf32>
    %cst_10 = arith.constant dense<0.000000e+00> : vector<32x32xf32>
    %9 = tpu.matmul %0, %8, %cst_10 {dimension_numbers = #tpu.dot_dimension_numbers<[1], [0], [0], [1], [0, 0, 1, 1], [], []>} : vector<32x16xf32>, vector<16x32xf32>, vector<32x32xf32> -> vector<32x32xf32>
    %c0_11 = arith.constant 0 : index
    %c1 = arith.constant 1 : index
    %c0_12 = arith.constant 0 : index
    %c0_13 = arith.constant 0 : index
    %10 = vector.load %arg4[%c0_11, %c1, %c0_12, %c0_13] : memref<1x6x32x32xf32, #tpu.memory_space<vmem>>, vector<1x1x32x32xf32>
    %11 = vector.shape_cast %10 : vector<1x1x32x32xf32> to vector<32x32xf32>
    %12 = vector.shape_cast %9 : vector<32x32xf32> to vector<1x1x32x32xf32>
    tpu.vector_store %arg4[%c0_11, %c1, %c0_12, %c0_13], %12 {strides = array<i32>} : memref<1x6x32x32xf32, #tpu.memory_space<vmem>>, vector<1x1x32x32xf32>,
    %c0_14 = arith.constant 0 : index
    %c32 = arith.constant 32 : index
    %c0_15 = arith.constant 0 : index
    %13 = vector.load %arg2[%c0_14, %c32, %c0_15] : memref<1x96x32xf32, #tpu.memory_space<vmem>>, vector<1x16x32xf32>
    %14 = vector.shape_cast %13 : vector<1x16x32xf32> to vector<16x32xf32>
    %cst_16 = arith.constant dense<0.000000e+00> : vector<32x32xf32>
    %15 = tpu.matmul %0, %14, %cst_16 {dimension_numbers = #tpu.dot_dimension_numbers<[1], [0], [0], [1], [0, 0, 1, 1], [], []>} : vector<32x16xf32>, vector<16x32xf32>, vector<32x32xf32> -> vector<32x32xf32>
    %c0_17 = arith.constant 0 : index
    %c2 = arith.constant 2 : index
    %c0_18 = arith.constant 0 : index
    %c0_19 = arith.constant 0 : index
    %16 = vector.load %arg4[%c0_17, %c2, %c0_18, %c0_19] : memref<1x6x32x32xf32, #tpu.memory_space<vmem>>, vector<1x1x32x32xf32>
    %17 = vector.shape_cast %16 : vector<1x1x32x32xf32> to vector<32x32xf32>
    %18 = vector.shape_cast %15 : vector<32x32xf32> to vector<1x1x32x32xf32>
    tpu.vector_store %arg4[%c0_17, %c2, %c0_18, %c0_19], %18 {strides = array<i32>} : memref<1x6x32x32xf32, #tpu.memory_space<vmem>>, vector<1x1x32x32xf32>,
    %c0_20 = arith.constant 0 : index
    %c48 = arith.constant 48 : index
    %c0_21 = arith.constant 0 : index
    %19 = vector.load %arg2[%c0_20, %c48, %c0_21] : memref<1x96x32xf32, #tpu.memory_space<vmem>>, vector<1x16x32xf32>
    %20 = vector.shape_cast %19 : vector<1x16x32xf32> to vector<16x32xf32>
    %cst_22 = arith.constant dense<0.000000e+00> : vector<32x32xf32>
    %21 = tpu.matmul %0, %20, %cst_22 {dimension_numbers = #tpu.dot_dimension_numbers<[1], [0], [0], [1], [0, 0, 1, 1], [], []>} : vector<32x16xf32>, vector<16x32xf32>, vector<32x32xf32> -> vector<32x32xf32>
    %c0_23 = arith.constant 0 : index
    %c3 = arith.constant 3 : index
    %c0_24 = arith.constant 0 : index
    %c0_25 = arith.constant 0 : index
    %22 = vector.load %arg4[%c0_23, %c3, %c0_24, %c0_25] : memref<1x6x32x32xf32, #tpu.memory_space<vmem>>, vector<1x1x32x32xf32>
    %23 = vector.shape_cast %22 : vector<1x1x32x32xf32> to vector<32x32xf32>
    %24 = vector.shape_cast %21 : vector<32x32xf32> to vector<1x1x32x32xf32>
    tpu.vector_store %arg4[%c0_23, %c3, %c0_24, %c0_25], %24 {strides = array<i32>} : memref<1x6x32x32xf32, #tpu.memory_space<vmem>>, vector<1x1x32x32xf32>,
    %c0_26 = arith.constant 0 : index
    %c64 = arith.constant 64 : index
    %c0_27 = arith.constant 0 : index
    %25 = vector.load %arg2[%c0_26, %c64, %c0_27] : memref<1x96x32xf32, #tpu.memory_space<vmem>>, vector<1x16x32xf32>
    %26 = vector.shape_cast %25 : vector<1x16x32xf32> to vector<16x32xf32>
    %cst_28 = arith.constant dense<0.000000e+00> : vector<32x32xf32>
    %27 = tpu.matmul %0, %26, %cst_28 {dimension_numbers = #tpu.dot_dimension_numbers<[1], [0], [0], [1], [0, 0, 1, 1], [], []>} : vector<32x16xf32>, vector<16x32xf32>, vector<32x32xf32> -> vector<32x32xf32>
    %c0_29 = arith.constant 0 : index
    %c4 = arith.constant 4 : index
    %c0_30 = arith.constant 0 : index
    %c0_31 = arith.constant 0 : index
    %28 = vector.load %arg4[%c0_29, %c4, %c0_30, %c0_31] : memref<1x6x32x32xf32, #tpu.memory_space<vmem>>, vector<1x1x32x32xf32>
    %29 = vector.shape_cast %28 : vector<1x1x32x32xf32> to vector<32x32xf32>
    %30 = vector.shape_cast %27 : vector<32x32xf32> to vector<1x1x32x32xf32>
    tpu.vector_store %arg4[%c0_29, %c4, %c0_30, %c0_31], %30 {strides = array<i32>} : memref<1x6x32x32xf32, #tpu.memory_space<vmem>>, vector<1x1x32x32xf32>,
    %c0_32 = arith.constant 0 : index
    %c80 = arith.constant 80 : index
    %c0_33 = arith.constant 0 : index
    %31 = vector.load %arg2[%c0_32, %c80, %c0_33] : memref<1x96x32xf32, #tpu.memory_space<vmem>>, vector<1x16x32xf32>
    %32 = vector.shape_cast %31 : vector<1x16x32xf32> to vector<16x32xf32>
    %cst_34 = arith.constant dense<0.000000e+00> : vector<32x32xf32>
    %33 = tpu.matmul %0, %32, %cst_34 {dimension_numbers = #tpu.dot_dimension_numbers<[1], [0], [0], [1], [0, 0, 1, 1], [], []>} : vector<32x16xf32>, vector<16x32xf32>, vector<32x32xf32> -> vector<32x32xf32>
    %c0_35 = arith.constant 0 : index
    %c5 = arith.constant 5 : index
    %c0_36 = arith.constant 0 : index
    %c0_37 = arith.constant 0 : index
    %34 = vector.load %arg4[%c0_35, %c5, %c0_36, %c0_37] : memref<1x6x32x32xf32, #tpu.memory_space<vmem>>, vector<1x1x32x32xf32>
    %35 = vector.shape_cast %34 : vector<1x1x32x32xf32> to vector<32x32xf32>
    %36 = vector.shape_cast %33 : vector<32x32xf32> to vector<1x1x32x32xf32>
    tpu.vector_store %arg4[%c0_35, %c5, %c0_36, %c0_37], %36 {strides = array<i32>} : memref<1x6x32x32xf32, #tpu.memory_space<vmem>>, vector<1x1x32x32xf32>,
    return
  }
  func.func @transform_0(%arg0: i32, %arg1: i32) -> (i32, i32, i32) {
    %c0_i32 = arith.constant 0 : i32
    %c0_i32_0 = arith.constant 0 : i32
    %c0_i32_1 = arith.constant 0 : i32
    return %arg0, %c0_i32, %c0_i32_0 : i32, i32, i32
  }
  func.func @transform_1(%arg0: i32, %arg1: i32) -> (i32, i32) {
    %c0_i32 = arith.constant 0 : i32
    %c0_i32_0 = arith.constant 0 : i32
    return %arg1, %c0_i32 : i32, i32
  }
  func.func @transform_2(%arg0: i32, %arg1: i32) -> (i32, i32, i32, i32) {
    %c0_i32 = arith.constant 0 : i32
    %c0_i32_0 = arith.constant 0 : i32
    %c0_i32_1 = arith.constant 0 : i32
    return %arg0, %c0_i32, %arg1, %c0_i32_0 : i32, i32, i32, i32
  }
}

module attributes {stable_mosaic.version = 11 : i64} {
  func.func @_conv1x1_kernel(%arg0: i32, %arg1: i32, %arg2: memref<1x4x256xf32, #tpu.memory_space<vmem>>, %arg3: memref<6x4xf32, #tpu.memory_space<vmem>>, %arg4: memref<6x1xf32, #tpu.memory_space<vmem>>, %arg5: memref<1x6x256xf32, #tpu.memory_space<vmem>>) attributes {dimension_semantics = [#tpu.dimension_semantics<parallel>, #tpu.dimension_semantics<parallel>], iteration_bounds = array<i64: 2, 1>, scalar_prefetch = 0 : i64, scratch_operands = 0 : i64, tpu.core_type = #tpu.core_type<tc>, window_params = [{transform_indices = @transform_0, window_bounds = array<i64: 1, 4, 256>}, {pipeline_mode = #tpu.pipeline_mode<synchronous>, transform_indices = @transform_1, window_bounds = array<i64: 6, 4>}, {pipeline_mode = #tpu.pipeline_mode<synchronous>, transform_indices = @transform_2, window_bounds = array<i64: 6, 1>}, {transform_indices = @transform_3, window_bounds = array<i64: 1, 6, 256>}]} {
    %c0 = arith.constant 0 : index
    %c0_0 = arith.constant 0 : index
    %0 = vector.load %arg3[%c0, %c0_0] : memref<6x4xf32, #tpu.memory_space<vmem>>, vector<6x4xf32>
    %c0_1 = arith.constant 0 : index
    %c0_2 = arith.constant 0 : index
    %c0_3 = arith.constant 0 : index
    %1 = vector.load %arg2[%c0_1, %c0_2, %c0_3] : memref<1x4x256xf32, #tpu.memory_space<vmem>>, vector<1x4x256xf32>
    %2 = vector.shape_cast %1 : vector<1x4x256xf32> to vector<4x256xf32>
    %cst = arith.constant dense<0.000000e+00> : vector<6x256xf32>
    %3 = tpu.matmul %0, %2, %cst {dimension_numbers = #tpu.dot_dimension_numbers<[1], [0], [0], [1], [0, 0, 1, 1], [], []>} : vector<6x4xf32>, vector<4x256xf32>, vector<6x256xf32> -> vector<6x256xf32>
    %c0_4 = arith.constant 0 : index
    %c0_5 = arith.constant 0 : index
    %4 = vector.load %arg4[%c0_4, %c0_5] : memref<6x1xf32, #tpu.memory_space<vmem>>, vector<6x1xf32>
    %5 = vector.broadcast %4 : vector<6x1xf32> to vector<6x256xf32>
    %6 = arith.addf %3, %5 : vector<6x256xf32>
    %c0_6 = arith.constant 0 : index
    %c0_7 = arith.constant 0 : index
    %c0_8 = arith.constant 0 : index
    %7 = vector.load %arg5[%c0_6, %c0_7, %c0_8] : memref<1x6x256xf32, #tpu.memory_space<vmem>>, vector<1x6x256xf32>
    %8 = vector.shape_cast %7 : vector<1x6x256xf32> to vector<6x256xf32>
    %9 = vector.shape_cast %6 : vector<6x256xf32> to vector<1x6x256xf32>
    tpu.vector_store %arg5[%c0_6, %c0_7, %c0_8], %9 {strides = array<i32>} : memref<1x6x256xf32, #tpu.memory_space<vmem>>, vector<1x6x256xf32>,
    return
  }
  func.func @transform_0(%arg0: i32, %arg1: i32) -> (i32, i32, i32) {
    %c0_i32 = arith.constant 0 : i32
    %c0_i32_0 = arith.constant 0 : i32
    return %arg0, %c0_i32, %arg1 : i32, i32, i32
  }
  func.func @transform_1(%arg0: i32, %arg1: i32) -> (i32, i32) {
    %c0_i32 = arith.constant 0 : i32
    %c0_i32_0 = arith.constant 0 : i32
    %c0_i32_1 = arith.constant 0 : i32
    return %c0_i32, %c0_i32_0 : i32, i32
  }
  func.func @transform_2(%arg0: i32, %arg1: i32) -> (i32, i32) {
    %c0_i32 = arith.constant 0 : i32
    %c0_i32_0 = arith.constant 0 : i32
    %c0_i32_1 = arith.constant 0 : i32
    return %c0_i32, %c0_i32_0 : i32, i32
  }
  func.func @transform_3(%arg0: i32, %arg1: i32) -> (i32, i32, i32) {
    %c0_i32 = arith.constant 0 : i32
    %c0_i32_0 = arith.constant 0 : i32
    return %arg0, %c0_i32, %arg1 : i32, i32, i32
  }
}

module attributes {stable_mosaic.version = 11 : i64} {
  func.func @_w_resize_kernel(%arg0: i32, %arg1: i32, %arg2: memref<1x96x16xf32, #tpu.memory_space<vmem>>, %arg3: memref<16x32xf32, #tpu.memory_space<vmem>>, %arg4: memref<1x96x32xf32, #tpu.memory_space<vmem>>) attributes {dimension_semantics = [#tpu.dimension_semantics<parallel>, #tpu.dimension_semantics<parallel>], iteration_bounds = array<i64: 2, 1>, scalar_prefetch = 0 : i64, scratch_operands = 0 : i64, tpu.core_type = #tpu.core_type<tc>, window_params = [{transform_indices = @transform_0, window_bounds = array<i64: 1, 96, 16>}, {pipeline_mode = #tpu.pipeline_mode<synchronous>, transform_indices = @transform_1, window_bounds = array<i64: 16, 32>}, {transform_indices = @transform_2, window_bounds = array<i64: 1, 96, 32>}]} {
    %c0 = arith.constant 0 : index
    %c0_0 = arith.constant 0 : index
    %c0_1 = arith.constant 0 : index
    %0 = vector.load %arg2[%c0, %c0_0, %c0_1] : memref<1x96x16xf32, #tpu.memory_space<vmem>>, vector<1x96x16xf32>
    %1 = vector.shape_cast %0 : vector<1x96x16xf32> to vector<96x16xf32>
    %c0_2 = arith.constant 0 : index
    %c0_3 = arith.constant 0 : index
    %2 = vector.load %arg3[%c0_2, %c0_3] : memref<16x32xf32, #tpu.memory_space<vmem>>, vector<16x32xf32>
    %cst = arith.constant dense<0.000000e+00> : vector<96x32xf32>
    %3 = tpu.matmul %1, %2, %cst {dimension_numbers = #tpu.dot_dimension_numbers<[1], [0], [0], [1], [0, 0, 1, 1], [], []>} : vector<96x16xf32>, vector<16x32xf32>, vector<96x32xf32> -> vector<96x32xf32>
    %c0_4 = arith.constant 0 : index
    %c0_5 = arith.constant 0 : index
    %c0_6 = arith.constant 0 : index
    %4 = vector.load %arg4[%c0_4, %c0_5, %c0_6] : memref<1x96x32xf32, #tpu.memory_space<vmem>>, vector<1x96x32xf32>
    %5 = vector.shape_cast %4 : vector<1x96x32xf32> to vector<96x32xf32>
    %6 = vector.shape_cast %3 : vector<96x32xf32> to vector<1x96x32xf32>
    tpu.vector_store %arg4[%c0_4, %c0_5, %c0_6], %6 {strides = array<i32>} : memref<1x96x32xf32, #tpu.memory_space<vmem>>, vector<1x96x32xf32>,
    return
  }
  func.func @transform_0(%arg0: i32, %arg1: i32) -> (i32, i32, i32) {
    %c0_i32 = arith.constant 0 : i32
    %c0_i32_0 = arith.constant 0 : i32
    return %arg0, %arg1, %c0_i32 : i32, i32, i32
  }
  func.func @transform_1(%arg0: i32, %arg1: i32) -> (i32, i32) {
    %c0_i32 = arith.constant 0 : i32
    %c0_i32_0 = arith.constant 0 : i32
    %c0_i32_1 = arith.constant 0 : i32
    return %c0_i32, %c0_i32_0 : i32, i32
  }
  func.func @transform_2(%arg0: i32, %arg1: i32) -> (i32, i32, i32) {
    %c0_i32 = arith.constant 0 : i32
    %c0_i32_0 = arith.constant 0 : i32
    return %arg0, %arg1, %c0_i32 : i32, i32, i32
  }
}

</mosaic_0001>

<llo_original>
// kernel: _pse_head_forward_impl.3
$region0: #{_pse_head_forward_impl.3}
  #allocation0 [shape = 'u32[]', space=smem, size = 0x4, offset = 0x4, fixed_abs, tag = 'smem constant byte address 0x4 - core index']
  #allocation1 [shape = 'u32[144,128]{1,0:T(1,128)}', space=vmem, size = 0x12000, scoped, tag = 'internal scratch']
  %s0 = inlined_call_operand.vmem [shape: f32[2,4,256], index: 0, kind: input, shape index: {}]
  %s1 = inlined_call_operand.vmem [shape: f32[6,4], index: 1, kind: input, shape index: {}]
  %s2 = inlined_call_operand.vmem [shape: f32[6,1], index: 2, kind: input, shape index: {}]
  %s3 = inlined_call_operand.vmem [shape: f32[2,6,256], index: 3, kind: output, shape index: {}]
  %s4 = sld [smem:[#allocation0]]
  $region45: #{_pse_head_forward_impl.3} parent=0
    _
  %s6 = ssub.s32 1, %s4
  %s7 = scalar_select 0, %s6, %s4
  loop: start=0, step=1, limit=4
  $region2: #{_pse_head_forward_impl.3} parent=0 // loop_pre_header
    _
  $region3: #{_pse_head_forward_impl.3} parent=0 // loop_header
    %s9 = sphi 0, %s13
    %p10 = scmp.ge.s32.totalorder %s9, 4
    %s16 = sphi 0, %s28
    %s17 = sphi 0, %s24
    %s18 = sphi 0, %s16
    %s19 = sphi 0, %s17
    %s20 = sphi 0, %s18
    %s21 = sphi 0, %s19
    %s33 = sphi 0, %s35
    %s36 = sphi 0, %s33
    %s37 = sphi 0, %s36
    %s53 = sphi 0, %s37
    %s57 = sphi 0, %s57
    %s59 = sphi 0, %s57
    %s60 = sphi 0, %s59
    %s74 = sphi 0, %s60
    %s78 = sphi 0, %s78
    %s80 = sphi 0, %s78
    %s81 = sphi 0, %s80
    %s95 = sphi 0, %s81
    %s103 = sphi 0, %s105
    %s106 = sphi 0, %s103
    %s107 = sphi 0, %s106
    %s123 = sphi 0, %s107
  $region4: #{_pse_head_forward_impl.3} parent=0 // loop_header_branch
    %12 = sbr.rel (%p10) target = $region8
  $region5: #{_pse_head_forward_impl.3} parent=0 // loop_body
    %s14 = ssub.s32 %s9, 1
    %s15 = ssub.s32 %s9, 2
    %s22 = sadd.s32 1, %s17
    %p23 = scmp.ge.s32.totalorder %s22, 1
    %s24 = scalar_select %p23, 0, %s22
    %s25 = sadd.s32 1, %s16
    %s26 = scalar_select %p23, %s25, %s16
    %p27 = scmp.ge.s32.totalorder %s26, 2
    %s28 = scalar_select %p27, 0, %s26
    %s29 = ssub.s32 %s16, %s28
    %s30 = ssub.s32 %s17, %s24
    %s31 = sor.u32 %s29, %s30
    %p32 = scmp.eq.s32.totalorder %s31, 0
    %s34 = sadd.s32 %s33, 1
    %s35 = scalar_select %p32, %s33, %s34
    %p38 = pneg %p32
    %p39 = scmp.eq.s32.totalorder %s9, 1
    %p40 = por %p38, %p39
    %p41 = scmp.ne.s32.totalorder %s33, %s36
    %p42 = scmp.eq.s32.totalorder %s9, 0
    %p43 = por %p41, %p42
    %p44 = scmp.ne.s32.totalorder %s33, %s36
    %p45 = scmp.eq.s32.totalorder %s14, 1
    %p46 = por %p44, %p45
    %p47 = scmp.ne.s32.totalorder %s36, %s37
    %p48 = scmp.eq.s32.totalorder %s14, 0
    %p49 = por %p47, %p48
    %p50 = scmp.ne.s32.totalorder %s36, %s37
    %p51 = scmp.eq.s32.totalorder %s15, 1
    %p52 = por %p50, %p51
    %p54 = scmp.ne.s32.totalorder %s37, %s53
    %p55 = scmp.eq.s32.totalorder %s15, 0
    %p56 = por %p54, %p55
    %s58 = sadd.s32 %s57, 1
    %p61 = scmp.eq.s32.totalorder %s9, 1
    %p62 = scmp.ne.s32.totalorder %s57, %s59
    %p63 = scmp.eq.s32.totalorder %s9, 0
    %p64 = por %p62, %p63
    %p65 = scmp.ne.s32.totalorder %s57, %s59
    %p66 = scmp.eq.s32.totalorder %s14, 1
    %p67 = por %p65, %p66
    %p68 = scmp.ne.s32.totalorder %s59, %s60
    %p69 = scmp.eq.s32.totalorder %s14, 0
    %p70 = por %p68, %p69
    %p71 = scmp.ne.s32.totalorder %s59, %s60
    %p72 = scmp.eq.s32.totalorder %s15, 1
    %p73 = por %p71, %p72
    %p75 = scmp.ne.s32.totalorder %s60, %s74
    %p76 = scmp.eq.s32.totalorder %s15, 0
    %p77 = por %p75, %p76
    %s79 = sadd.s32 %s78, 1
    %p82 = scmp.eq.s32.totalorder %s9, 1
    %p83 = scmp.ne.s32.totalorder %s78, %s80
    %p84 = scmp.eq.s32.totalorder %s9, 0
    %p85 = por %p83, %p84
    %p86 = scmp.ne.s32.totalorder %s78, %s80
    %p87 = scmp.eq.s32.totalorder %s14, 1
    %p88 = por %p86, %p87
    %p89 = scmp.ne.s32.totalorder %s80, %s81
    %p90 = scmp.eq.s32.totalorder %s14, 0
    %p91 = por %p89, %p90
    %p92 = scmp.ne.s32.totalorder %s80, %s81
    %p93 = scmp.eq.s32.totalorder %s15, 1
    %p94 = por %p92, %p93
    %p96 = scmp.ne.s32.totalorder %s81, %s95
    %p97 = scmp.eq.s32.totalorder %s15, 0
    %p98 = por %p96, %p97
    %s99 = ssub.s32 %s16, %s28
    %s100 = ssub.s32 %s17, %s24
    %s101 = sor.u32 %s99, %s100
    %p102 = scmp.eq.s32.totalorder %s101, 0
    %s104 = sadd.s32 %s103, 1
    %s105 = scalar_select %p102, %s103, %s104
    %p108 = pneg %p102
    %p109 = scmp.eq.s32.totalorder %s9, 1
    %p110 = por %p108, %p109
    %p111 = scmp.ne.s32.totalorder %s103, %s106
    %p112 = scmp.eq.s32.totalorder %s9, 0
    %p113 = por %p111, %p112
    %p114 = scmp.ne.s32.totalorder %s103, %s106
    %p115 = scmp.eq.s32.totalorder %s14, 1
    %p116 = por %p114, %p115
    %p117 = scmp.ne.s32.totalorder %s106, %s107
    %p118 = scmp.eq.s32.totalorder %s14, 0
    %p119 = por %p117, %p118
    %p120 = scmp.ne.s32.totalorder %s106, %s107
    %p121 = scmp.eq.s32.totalorder %s15, 1
    %p122 = por %p120, %p121
    %p124 = scmp.ne.s32.totalorder %s107, %s123
    %p125 = scmp.eq.s32.totalorder %s15, 0
    %p126 = por %p124, %p125
    %p127 = scmp.le.s32.totalorder 1, %s9
    %p128 = scmp.lt.s32.totalorder %s9, 3
    %p129 = pnand %p127, %p128
    %p130 = pneg %p129
    // Predicated region
    $region9: #{_pse_head_forward_impl.3} parent=5 // pred_check
      _
    $region10: #{_pse_head_forward_impl.3} parent=5 // pred_check_branch
      %132 = sbr.rel (%p129) target = $region12
    $region11: #{_pse_head_forward_impl.3} parent=5 // pred_region
      %s133 = ssub.s32 %s9, 1
      // Predicated region
      $region13: #{_pse_head_forward_impl.3} parent=11 // pred_check
        %p134 = pneg %p70
      $region14: #{_pse_head_forward_impl.3} parent=11 // pred_check_branch
        %136 = sbr.rel (%p134) target = $region16
      $region15: #{_pse_head_forward_impl.3} parent=11 // pred_region
        _
      $region16: #{_pse_head_forward_impl.3} parent=11 // pred_fallthru
        _
      // Predicated region
      $region17: #{_pse_head_forward_impl.3} parent=11 // pred_check
        %p137 = pneg %p91
      $region18: #{_pse_head_forward_impl.3} parent=11 // pred_check_branch
        %139 = sbr.rel (%p137) target = $region20
      $region19: #{_pse_head_forward_impl.3} parent=11 // pred_region
        _
      $region20: #{_pse_head_forward_impl.3} parent=11 // pred_fallthru
        _
    $region12: #{_pse_head_forward_impl.3} parent=5 // pred_fallthru
      _
    %p140 = scmp.lt.s32.totalorder %s9, 2
    // Predicated region
    $region21: #{_pse_head_forward_impl.3} parent=5 // pred_check
      %p141 = pneg %p140
    $region22: #{_pse_head_forward_impl.3} parent=5 // pred_check_branch
      %143 = sbr.rel (%p141) target = $region24
    $region23: #{_pse_head_forward_impl.3} parent=5 // pred_region
      // Predicated region
      $region25: #{_pse_head_forward_impl.3} parent=23 // pred_check
        %p144 = pneg %p43
      $region26: #{_pse_head_forward_impl.3} parent=23 // pred_check_branch
        %146 = sbr.rel (%p144) target = $region28
      $region27: #{_pse_head_forward_impl.3} parent=23 // pred_region
        %s147 = smul.u32 2, %s17
        %p148 = scmp.lt.s32.totalorder %s16, 1
        %s149 = scalar_select %p148, %s16, 1
        %p150 = scmp.lt.s32.totalorder %s147, 1
        %s151 = scalar_select %p150, %s147, 1
        %s152 = smul.addr %s149, 2
        %s153 = sadd.s32 %s151, %s152
        %s154 = smul.addr %s153, 4
        %s155 = scalar_lea.vmem %s0, %s154
        %s156 = smul.u32 2, %s17
      $region28: #{_pse_head_forward_impl.3} parent=23 // pred_fallthru
        _
    $region24: #{_pse_head_forward_impl.3} parent=5 // pred_fallthru
      _
    %p157 = scmp.le.s32.totalorder 1, %s9
    %p158 = scmp.lt.s32.totalorder %s9, 3
    %p159 = pnand %p157, %p158
    %p160 = pneg %p159
    // Predicated region
    $region29: #{_pse_head_forward_impl.3} parent=5 // pred_check
      _
    $region30: #{_pse_head_forward_impl.3} parent=5 // pred_check_branch
      %162 = sbr.rel (%p159) target = $region32
    $region31: #{_pse_head_forward_impl.3} parent=5 // pred_region
      %s163 = ssub.s32 %s9, 1
      %s164 = smul.u32 2, %s19
      %p165 = scmp.lt.s32.totalorder %s18, 1
      %s166 = scalar_select %p165, %s18, 1
      %p167 = scmp.lt.s32.totalorder %s164, 1
      %s168 = scalar_select %p167, %s164, 1
      %s169 = smul.addr %s166, 2
      %s170 = sadd.s32 %s168, %s169
      %s171 = smul.addr %s170, 4
      %s172 = scalar_lea.vmem %s0, %s171
      %p173 = pneg %p49
      %p174 = pneg %p46
      %p175 = pneg %p70
      %p176 = pneg %p67
      %p177 = pneg %p91
      %p178 = pneg %p88
      %p179 = pneg %p119
      %p180 = pneg %p116
      %s181 = smul.u32 2, %s19
      %p182 = scmp.lt.s32.totalorder %s18, 1
      %s183 = scalar_select %p182, %s18, 1
      %p184 = scmp.lt.s32.totalorder %s181, 1
      %s185 = scalar_select %p184, %s181, 1
      %s186 = smul.addr %s183, 2
      %s187 = sadd.s32 %s185, %s186
      %s188 = smul.addr %s187, 8
      %s189 = scalar_lea.vmem %s3, %s188
      %s190 = smul.u32 2, %s19
      %p191 = scmp.lt.s32.totalorder %s18, 1
      %s192 = scalar_select %p191, %s18, 1
      %p193 = scmp.lt.s32.totalorder %s190, 1
      %s194 = scalar_select %p193, %s190, 1
      %s195 = smul.addr %s192, 2
      %s196 = sadd.s32 %s194, %s195
      %s197 = smul.addr %s196, 4
      %s198 = scalar_lea.vmem %s0, %s197
      %s199 = smul.u32 2, %s19
      %s200 = smul.u32 2, %s19
      %p201 = scmp.lt.s32.totalorder %s18, 1
      %s202 = scalar_select %p201, %s18, 1
      %p203 = scmp.lt.s32.totalorder %s200, 1
      %s204 = scalar_select %p203, %s200, 1
      %s205 = smul.addr %s202, 2
      %s206 = sadd.s32 %s204, %s205
      %s207 = smul.addr %s206, 8
      %s208 = scalar_lea.vmem %s3, %s207
      %s209 = smul.u32 2, %s19
      %v210 = vld [vmem:[%s1] sm:$0x3f]
      %v211 = vld [vmem:[%s198] sm:$0xff]
      %v212 = vld [vmem:[%s2] sm:$0x3f]
      %214 = vset.pattern.permute.xlu0 0
      %215 = vperm.xlu0 %214, %v212
      %v216 = vpop.permute.xlu0 %215
      %v219 = vcombine.high %v211, %v211
      %vm220 = vcmask 31744
      %v222 = vsel %vm220, %v210, 0
      %vm224 = vcmask 1043456
      %v225 = vsel %vm224, %v211, 0
      %v227 = vsel %vm224, %v219, 0
      %229 = vmatprep.subr.mxu0 %v227
      %230 = vmatpush1.msra.mxu0 %v225
      %231 = vmatprep.subr.mxu0 0.0
      %232 = vmatpush1.msra.mxu0 0.0
      %233 = vmatprep.subr.mxu0 0.0
      %234 = vmatpush1.msra.mxu0 0.0
      %235 = vmatprep.subr.mxu0 0.0
      %236 = vmatpush1.msra.mxu0 0.0
      %237 = vmatprep.subr.mxu0 0.0
      %238 = vmatpush1.msra.mxu0 0.0
      %239 = vmatprep.subr.mxu0 0.0
      %240 = vmatpush1.msra.mxu0 0.0
      %241 = vmatprep.subr.mxu0 0.0
      %242 = vmatpush1.msra.mxu0 0.0
      %243 = vmatprep.subr.mxu0 0.0
      %244 = vmatpush1.msra.mxu0 0.0
      %245 = vmatprep.subr.mxu0 0.0
      %246 = vmatpush1.msra.mxu0 0.0
      %247 = vmatprep.subr.mxu0 0.0
      %248 = vmatpush1.msra.mxu0 0.0
      %249 = vmatprep.subr.mxu0 0.0
      %250 = vmatpush1.msra.mxu0 0.0
      %251 = vmatprep.subr.mxu0 0.0
      %252 = vmatpush1.msra.mxu0 0.0
      %253 = vmatprep.subr.mxu0 0.0
      %254 = vmatpush1.msra.mxu0 0.0
      %255 = vmatprep.subr.mxu0 0.0
      %256 = vmatpush1.msra.mxu0 0.0
      %257 = vmatprep.subr.mxu0 0.0
      %258 = vmatpush1.msra.mxu0 0.0
      %259 = vmatprep.subr.mxu0 0.0
      %260 = vmatpush1.msra.mxu0 0.0
      %261 = vmatprep.subr.mxu0 0.0
      %262 = vmatpush1.msra.mxu0 0.0
      %263 = vmatprep.subr.mxu0 0.0
      %264 = vmatpush1.msra.mxu0 0.0
      %265 = vmatprep.subr.mxu0 0.0
      %266 = vmatpush1.msra.mxu0 0.0
      %267 = vmatprep.subr.mxu0 0.0
      %268 = vmatpush1.msra.mxu0 0.0
      %269 = vmatprep.subr.mxu0 0.0
      %270 = vmatpush1.msra.mxu0 0.0
      %271 = vmatprep.subr.mxu0 0.0
      %272 = vmatpush1.msra.mxu0 0.0
      %273 = vmatprep.subr.mxu0 0.0
      %274 = vmatpush1.msra.mxu0 0.0
      %275 = vmatprep.subr.mxu0 0.0
      %276 = vmatpush1.msra.mxu0 0.0
      %277 = vmatprep.subr.mxu0 0.0
      %278 = vmatpush1.msra.mxu0 0.0
      %279 = vmatprep.subr.mxu0 0.0
      %280 = vmatpush1.msra.mxu0 0.0
      %281 = vmatprep.subr.mxu0 0.0
      %282 = vmatpush1.msra.mxu0 0.0
      %283 = vmatprep.subr.mxu0 0.0
      %284 = vmatpush1.msra.mxu0 0.0
      %285 = vmatprep.subr.mxu0 0.0
      %286 = vmatpush1.msra.mxu0 0.0
      %287 = vmatprep.subr.mxu0 0.0
      %288 = vmatpush1.msra.mxu0 0.0
      %289 = vmatprep.subr.mxu0 0.0
      %290 = vmatpush1.msra.mxu0 0.0
      %291 = vmatprep.subr.mxu0 0.0
      %292 = vmatpush1.msra.mxu0 0.0
      %293 = vmatprep.mubr.f32.mxu0 0.0
      %294 = vmatmul.mubr.f32.gmra.mrb[0].mxu0 %v222
      %v295 = vpop.f32.mrb[0].mxu0
      %v296 = vadd.f32 %v216, %v295
      %v297 = vpop.f32.mrb[0].mxu0
      %v298 = vadd.f32 %v216, %v297
      %299 = vdwg.mxu0
      %300 = vst [vmem:[%s208] sm:$0x3f] %v296
      %301 = vst [vmem:[%s208 + $0x8] sm:$0x3f] %v298
      %s302 = smul.u32 2, %s19
      %p303 = scmp.lt.s32.totalorder %s18, 1
      %s304 = scalar_select %p303, %s18, 1
      %p305 = scmp.lt.s32.totalorder %s302, 1
      %s306 = scalar_select %p305, %s302, 1
      %s307 = smul.addr %s304, 2
      %s308 = sadd.s32 %s306, %s307
      %s309 = smul.addr %s308, 8
      %s310 = scalar_lea.vmem %s3, %s309
      // Predicated region
      $region33: #{_pse_head_forward_impl.3} parent=31 // pred_check
        %p311 = pneg %p116
      $region34: #{_pse_head_forward_impl.3} parent=31 // pred_check_branch
        %313 = sbr.rel (%p311) target = $region36
      $region35: #{_pse_head_forward_impl.3} parent=31 // pred_region
        %s314 = smul.u32 2, %s19
      $region36: #{_pse_head_forward_impl.3} parent=31 // pred_fallthru
        _
    $region32: #{_pse_head_forward_impl.3} parent=5 // pred_fallthru
      _
    %p315 = scmp.le.s32.totalorder 2, %s9
    // Predicated region
    $region37: #{_pse_head_forward_impl.3} parent=5 // pred_check
      %p316 = pneg %p315
    $region38: #{_pse_head_forward_impl.3} parent=5 // pred_check_branch
      %318 = sbr.rel (%p316) target = $region40
    $region39: #{_pse_head_forward_impl.3} parent=5 // pred_region
      %s319 = ssub.s32 %s9, 2
      // Predicated region
      $region41: #{_pse_head_forward_impl.3} parent=39 // pred_check
        %p320 = pneg %p122
      $region42: #{_pse_head_forward_impl.3} parent=39 // pred_check_branch
        %322 = sbr.rel (%p320) target = $region44
      $region43: #{_pse_head_forward_impl.3} parent=39 // pred_region
        %s323 = smul.u32 2, %s21
        %p324 = scmp.lt.s32.totalorder %s20, 1
        %s325 = scalar_select %p324, %s20, 1
        %p326 = scmp.lt.s32.totalorder %s323, 1
        %s327 = scalar_select %p326, %s323, 1
        %s328 = smul.addr %s325, 2
        %s329 = sadd.s32 %s327, %s328
        %s330 = smul.addr %s329, 8
        %s331 = scalar_lea.vmem %s3, %s330
      $region44: #{_pse_head_forward_impl.3} parent=39 // pred_fallthru
        _
    $region40: #{_pse_head_forward_impl.3} parent=5 // pred_fallthru
      _
  $region6: #{_pse_head_forward_impl.3} parent=0 // loop_footer
    %s13 = sadd.s32 1, %s9
  $region7: #{_pse_head_forward_impl.3} parent=0 // loop_footer_branch
    %8 = sbr.rel target = $region3
  $region8: #{_pse_head_forward_impl.3} parent=0 // loop_exit
    _

// kernel: _pse_head_forward_impl.5
$region0: #{_pse_head_forward_impl.5}
  #allocation0 [shape = 'u32[]', space=smem, size = 0x4, offset = 0x4, fixed_abs, tag = 'smem constant byte address 0x4 - core index']
  #allocation1 [shape = 'u32[144,128]{1,0:T(1,128)}', space=vmem, size = 0x12000, scoped, tag = 'internal scratch']
  %s0 = inlined_call_operand.vmem [shape: f32[2,96,32], index: 0, kind: input, shape index: {}]
  %s1 = inlined_call_operand.vmem [shape: f32[32,16], index: 1, kind: input, shape index: {}]
  %s2 = inlined_call_operand.hbm [shape: f32[2,6,32,32], index: 2, kind: output, shape index: {}]
  %s3 = sld [smem:[#allocation0]]
  $region41: #{_pse_head_forward_impl.5} parent=0
    _
  %s5 = ssub.s32 1, %s3
  %s6 = scalar_select 0, %s5, %s3
  $region1: #{_pse_head_forward_impl.5} parent=0
    #allocation2 [shape = 'u8[196608]{0}', space=vmem, size = 0x30000, scoped, tag = 'output window, operand 0']
    #allocation3 [shape = 's32[2]{0}', space=sflag, size = 0x8, scoped, tag = 'scoped memory for _pse_head_forward_impl.5']
    %7 = vsyncpa [#allocation3], 0
    %s8 = scalar_lea.sflag [#allocation3], 1
    %9 = vsyncpa %s8, 0
    loop: start=0, step=1, limit=4
    $region2: #{_pse_head_forward_impl.5} parent=1 // loop_pre_header
      _
    $region3: #{_pse_head_forward_impl.5} parent=1 // loop_header
      %s11 = sphi 0, %s15
      %p12 = scmp.ge.s32.totalorder %s11, 4
      %s18 = sphi 0, %s30
      %s19 = sphi 0, %s26
      %s20 = sphi 0, %s18
      %s21 = sphi 0, %s19
      %s22 = sphi 0, %s20
      %s23 = sphi 0, %s21
      %s33 = sphi 0, %s35
      %s36 = sphi 0, %s33
      %s37 = sphi 0, %s36
      %s53 = sphi 0, %s37
      %s59 = sphi 0, %s61
      %s62 = sphi 0, %s59
      %s63 = sphi 0, %s62
      %s79 = sphi 0, %s63
      %s87 = sphi 0, %s89
      %s90 = sphi 0, %s87
      %s91 = sphi 0, %s90
      %s107 = sphi 0, %s91
    $region4: #{_pse_head_forward_impl.5} parent=1 // loop_header_branch
      %14 = sbr.rel (%p12) target = $region8
    $region5: #{_pse_head_forward_impl.5} parent=1 // loop_body
      %s16 = ssub.s32 %s11, 1
      %s17 = ssub.s32 %s11, 2
      %s24 = sadd.s32 1, %s19
      %p25 = scmp.ge.s32.totalorder %s24, 1
      %s26 = scalar_select %p25, 0, %s24
      %s27 = sadd.s32 1, %s18
      %s28 = scalar_select %p25, %s27, %s18
      %p29 = scmp.ge.s32.totalorder %s28, 2
      %s30 = scalar_select %p29, 0, %s28
      %s31 = ssub.s32 %s18, %s30
      %p32 = scmp.eq.s32.totalorder %s31, 0
      %s34 = sadd.s32 %s33, 1
      %s35 = scalar_select %p32, %s33, %s34
      %p38 = pneg %p32
      %p39 = scmp.eq.s32.totalorder %s11, 1
      %p40 = por %p38, %p39
      %p41 = scmp.ne.s32.totalorder %s33, %s36
      %p42 = scmp.eq.s32.totalorder %s11, 0
      %p43 = por %p41, %p42
      %p44 = scmp.ne.s32.totalorder %s33, %s36
      %p45 = scmp.eq.s32.totalorder %s16, 1
      %p46 = por %p44, %p45
      %p47 = scmp.ne.s32.totalorder %s36, %s37
      %p48 = scmp.eq.s32.totalorder %s16, 0
      %p49 = por %p47, %p48
      %p50 = scmp.ne.s32.totalorder %s36, %s37
      %p51 = scmp.eq.s32.totalorder %s17, 1
      %p52 = por %p50, %p51
      %p54 = scmp.ne.s32.totalorder %s37, %s53
      %p55 = scmp.eq.s32.totalorder %s17, 0
      %p56 = por %p54, %p55
      %s57 = ssub.s32 %s19, %s26
      %p58 = scmp.eq.s32.totalorder %s57, 0
      %s60 = sadd.s32 %s59, 1
      %s61 = scalar_select %p58, %s59, %s60
      %p64 = pneg %p58
      %p65 = scmp.eq.s32.totalorder %s11, 1
      %p66 = por %p64, %p65
      %p67 = scmp.ne.s32.totalorder %s59, %s62
      %p68 = scmp.eq.s32.totalorder %s11, 0
      %p69 = por %p67, %p68
      %p70 = scmp.ne.s32.totalorder %s59, %s62
      %p71 = scmp.eq.s32.totalorder %s16, 1
      %p72 = por %p70, %p71
      %p73 = scmp.ne.s32.totalorder %s62, %s63
      %p74 = scmp.eq.s32.totalorder %s16, 0
      %p75 = por %p73, %p74
      %p76 = scmp.ne.s32.totalorder %s62, %s63
      %p77 = scmp.eq.s32.totalorder %s17, 1
      %p78 = por %p76, %p77
      %p80 = scmp.ne.s32.totalorder %s63, %s79
      %p81 = scmp.eq.s32.totalorder %s17, 0
      %p82 = por %p80, %p81
      %s83 = ssub.s32 %s18, %s30
      %s84 = ssub.s32 %s19, %s26
      %s85 = sor.u32 %s83, %s84
      %p86 = scmp.eq.s32.totalorder %s85, 0
      %s88 = sadd.s32 %s87, 1
      %s89 = scalar_select %p86, %s87, %s88
      %p92 = pneg %p86
      %p93 = scmp.eq.s32.totalorder %s11, 1
      %p94 = por %p92, %p93
      %p95 = scmp.ne.s32.totalorder %s87, %s90
      %p96 = scmp.eq.s32.totalorder %s11, 0
      %p97 = por %p95, %p96
      %p98 = scmp.ne.s32.totalorder %s87, %s90
      %p99 = scmp.eq.s32.totalorder %s16, 1
      %p100 = por %p98, %p99
      %p101 = scmp.ne.s32.totalorder %s90, %s91
      %p102 = scmp.eq.s32.totalorder %s16, 0
      %p103 = por %p101, %p102
      %p104 = scmp.ne.s32.totalorder %s90, %s91
      %p105 = scmp.eq.s32.totalorder %s17, 1
      %p106 = por %p104, %p105
      %p108 = scmp.ne.s32.totalorder %s91, %s107
      %p109 = scmp.eq.s32.totalorder %s17, 0
      %p110 = por %p108, %p109
      %p111 = scmp.le.s32.totalorder 1, %s11
      %p112 = scmp.lt.s32.totalorder %s11, 3
      %p113 = pnand %p111, %p112
      %p114 = pneg %p113
      // Predicated region
      $region9: #{_pse_head_forward_impl.5} parent=5 // pred_check
        _
      $region10: #{_pse_head_forward_impl.5} parent=5 // pred_check_branch
        %116 = sbr.rel (%p113) target = $region12
      $region11: #{_pse_head_forward_impl.5} parent=5 // pred_region
        %s117 = ssub.s32 %s11, 1
        // Predicated region
        $region13: #{_pse_head_forward_impl.5} parent=11 // pred_check
          %p118 = pneg %p75
        $region14: #{_pse_head_forward_impl.5} parent=11 // pred_check_branch
          %120 = sbr.rel (%p118) target = $region16
        $region15: #{_pse_head_forward_impl.5} parent=11 // pred_region
          %s121 = smul.u32 4, %s21
          %p122 = scmp.lt.s32.totalorder %s121, 3
          %s123 = scalar_select %p122, %s121, 3
          %s124 = smul.addr %s123, 8
          %s125 = scalar_lea.vmem %s1, %s124
          %s126 = smul.u32 4, %s21
        $region16: #{_pse_head_forward_impl.5} parent=11 // pred_fallthru
          _
      $region12: #{_pse_head_forward_impl.5} parent=5 // pred_fallthru
        _
      %p127 = scmp.lt.s32.totalorder %s11, 2
      // Predicated region
      $region17: #{_pse_head_forward_impl.5} parent=5 // pred_check
        %p128 = pneg %p127
      $region18: #{_pse_head_forward_impl.5} parent=5 // pred_check_branch
        %130 = sbr.rel (%p128) target = $region20
      $region19: #{_pse_head_forward_impl.5} parent=5 // pred_region
        // Predicated region
        $region21: #{_pse_head_forward_impl.5} parent=19 // pred_check
          %p131 = pneg %p43
        $region22: #{_pse_head_forward_impl.5} parent=19 // pred_check_branch
          %133 = sbr.rel (%p131) target = $region24
        $region23: #{_pse_head_forward_impl.5} parent=19 // pred_region
          %p134 = scmp.lt.s32.totalorder %s18, 1
          %s135 = scalar_select %p134, %s18, 1
          %s136 = smul.addr %s135, 12
          %s137 = smul.addr %s136, 8
          %s138 = scalar_lea.vmem %s0, %s137
        $region24: #{_pse_head_forward_impl.5} parent=19 // pred_fallthru
          _
      $region20: #{_pse_head_forward_impl.5} parent=5 // pred_fallthru
        _
      %p139 = scmp.le.s32.totalorder 1, %s11
      %p140 = scmp.lt.s32.totalorder %s11, 3
      %p141 = pnand %p139, %p140
      %p142 = pneg %p141
      // Predicated region
      $region25: #{_pse_head_forward_impl.5} parent=5 // pred_check
        _
      $region26: #{_pse_head_forward_impl.5} parent=5 // pred_check_branch
        %144 = sbr.rel (%p141) target = $region28
      $region27: #{_pse_head_forward_impl.5} parent=5 // pred_region
        %s145 = ssub.s32 %s11, 1
        %p146 = scmp.lt.s32.totalorder %s20, 1
        %s147 = scalar_select %p146, %s20, 1
        %s148 = smul.addr %s147, 12
        %s149 = smul.addr %s148, 8
        %s150 = scalar_lea.vmem %s0, %s149
        %p151 = pneg %p49
        %p152 = pneg %p46
        %s153 = smul.u32 4, %s21
        %p154 = scmp.lt.s32.totalorder %s153, 3
        %s155 = scalar_select %p154, %s153, 3
        %s156 = smul.addr %s155, 8
        %s157 = scalar_lea.vmem %s1, %s156
        %p158 = pneg %p75
        %p159 = pneg %p72
        %p160 = pneg %p103
        %p161 = pneg %p100
        %s162 = sand.u32 %s90, 1
        %s163 = scalar_lea.sflag [#allocation3], %s162
        %s164 = sand.u32 %s90, 1
        %s165 = smul.addr %s164, 192
        %s166 = scalar_lea.vmem [#allocation2], %s165
        %p167 = scmp.lt.s32.totalorder %s20, 1
        %s168 = scalar_select %p167, %s20, 1
        %s169 = smul.addr %s168, 12
        %s170 = smul.addr %s169, 8
        %s171 = scalar_lea.vmem %s0, %s170
        %s172 = smul.u32 4, %s21
        %p173 = scmp.lt.s32.totalorder %s172, 3
        %s174 = scalar_select %p173, %s172, 3
        %s175 = smul.addr %s174, 8
        %s176 = scalar_lea.vmem %s1, %s175
        %s177 = smul.u32 4, %s21
        %s178 = smul.u32 4, %s21
        %v179 = vld [vmem:[%s176] sm:$0xff]
        %v180 = vld [vmem:[%s176 + $0x8] sm:$0xff]
        %v181 = vld [vmem:[%s176 + $0x10] sm:$0xff]
        %v182 = vld [vmem:[%s176 + $0x18] sm:$0xff]
        %v183 = vld [vmem:[%s171] sm:$0xff]
        %v184 = vld [vmem:[%s171 + $0x8] sm:$0xff]
        %vm185 = vcmask 130048
        %v187 = vsel %vm185, %v179, 0
        %v190 = vsel %vm185, %v180, 0
        %v193 = vsel %vm185, %v181, 0
        %v196 = vsel %vm185, %v182, 0
        %198 = vmatprep.subr.mxu0 0.0
        %199 = vmatpush1.msra.mxu0 %v183
        %200 = vmatprep.subr.mxu0 0.0
        %201 = vmatpush1.msra.mxu0 %v184
        %202 = vmatprep.subr.mxu0 0.0
        %203 = vmatpush1.msra.mxu0 0.0
        %204 = vmatprep.subr.mxu0 0.0
        %205 = vmatpush1.msra.mxu0 0.0
        %206 = vmatprep.subr.mxu0 0.0
        %207 = vmatpush1.msra.mxu0 0.0
        %208 = vmatprep.subr.mxu0 0.0
        %209 = vmatpush1.msra.mxu0 0.0
        %210 = vmatprep.subr.mxu0 0.0
        %211 = vmatpush1.msra.mxu0 0.0
        %212 = vmatprep.subr.mxu0 0.0
        %213 = vmatpush1.msra.mxu0 0.0
        %214 = vmatprep.subr.mxu0 0.0
        %215 = vmatpush1.msra.mxu0 0.0
        %216 = vmatprep.subr.mxu0 0.0
        %217 = vmatpush1.msra.mxu0 0.0
        %218 = vmatprep.subr.mxu0 0.0
        %219 = vmatpush1.msra.mxu0 0.0
        %220 = vmatprep.subr.mxu0 0.0
        %221 = vmatpush1.msra.mxu0 0.0
        %222 = vmatprep.subr.mxu0 0.0
        %223 = vmatpush1.msra.mxu0 0.0
        %224 = vmatprep.subr.mxu0 0.0
        %225 = vmatpush1.msra.mxu0 0.0
        %226 = vmatprep.subr.mxu0 0.0
        %227 = vmatpush1.msra.mxu0 0.0
        %228 = vmatprep.subr.mxu0 0.0
        %229 = vmatpush1.msra.mxu0 0.0
        %230 = vmatprep.subr.mxu0 0.0
        %231 = vmatpush1.msra.mxu0 0.0
        %232 = vmatprep.subr.mxu0 0.0
        %233 = vmatpush1.msra.mxu0 0.0
        %234 = vmatprep.subr.mxu0 0.0
        %235 = vmatpush1.msra.mxu0 0.0
        %236 = vmatprep.subr.mxu0 0.0
        %237 = vmatpush1.msra.mxu0 0.0
        %238 = vmatprep.subr.mxu0 0.0
        %239 = vmatpush1.msra.mxu0 0.0
        %240 = vmatprep.subr.mxu0 0.0
        %241 = vmatpush1.msra.mxu0 0.0
        %242 = vmatprep.subr.mxu0 0.0
        %243 = vmatpush1.msra.mxu0 0.0
        %244 = vmatprep.subr.mxu0 0.0
        %245 = vmatpush1.msra.mxu0 0.0
        %246 = vmatprep.subr.mxu0 0.0
        %247 = vmatpush1.msra.mxu0 0.0
        %248 = vmatprep.subr.mxu0 0.0
        %249 = vmatpush1.msra.mxu0 0.0
        %250 = vmatprep.subr.mxu0 0.0
        %251 = vmatpush1.msra.mxu0 0.0
        %252 = vmatprep.subr.mxu0 0.0
        %253 = vmatpush1.msra.mxu0 0.0
        %254 = vmatprep.subr.mxu0 0.0
        %255 = vmatpush1.msra.mxu0 0.0
        %256 = vmatprep.subr.mxu0 0.0
        %257 = vmatpush1.msra.mxu0 0.0
        %258 = vmatprep.subr.mxu0 0.0
        %259 = vmatpush1.msra.mxu0 0.0
        %260 = vmatprep.subr.mxu0 0.0
        %261 = vmatpush1.msra.mxu0 0.0
        %262 = vmatprep.mubr.f32.mxu0 0.0
        %263 = vmatmul.mubr.f32.gmra.mrb[0].mxu0 %v187
        %v264 = vpop.f32.mrb[0].mxu0
        %v265 = vadd.f32 0.0, %v264
        %v266 = vpop.f32.mrb[0].mxu0
        %267 = vmatprep.mubr.f32.mxu0 0.0
        %268 = vmatmul.mubr.f32.gmra.mrb[0].mxu0 %v190
        %v269 = vpop.f32.mrb[0].mxu0
        %v270 = vadd.f32 0.0, %v269
        %v271 = vpop.f32.mrb[0].mxu0
        %272 = vmatprep.mubr.f32.mxu0 0.0
        %273 = vmatmul.mubr.f32.gmra.mrb[0].mxu0 %v193
        %v274 = vpop.f32.mrb[0].mxu0
        %v275 = vadd.f32 0.0, %v274
        %v276 = vpop.f32.mrb[0].mxu0
        %277 = vmatprep.mubr.f32.mxu0 0.0
        %278 = vmatmul.mubr.f32.gmra.mrb[0].mxu0 %v196
        %v279 = vpop.f32.mrb[0].mxu0
        %v280 = vadd.f32 0.0, %v279
        %v281 = vpop.f32.mrb[0].mxu0
        %282 = vdwg.mxu0
        %vm283 = vcmask 261120
        %284 = vst.msk [vmem:[%s166] sm:$0xff] %vm283, %v265
        %285 = vst.msk [vmem:[%s166 + $0x8] sm:$0xff] %vm283, %v270
        %286 = vst.msk [vmem:[%s166 + $0x10] sm:$0xff] %vm283, %v275
        %287 = vst.msk [vmem:[%s166 + $0x18] sm:$0xff] %vm283, %v280
        %v288 = vld [vmem:[%s171 + $0x10] sm:$0xff]
        %v289 = vld [vmem:[%s171 + $0x18] sm:$0xff]
        %290 = vmatprep.subr.mxu0 0.0
        %291 = vmatpush1.msra.mxu0 %v288
        %292 = vmatprep.subr.mxu0 0.0
        %293 = vmatpush1.msra.mxu0 %v289
        %294 = vmatprep.subr.mxu0 0.0
        %295 = vmatpush1.msra.mxu0 0.0
        %296 = vmatprep.subr.mxu0 0.0
        %297 = vmatpush1.msra.mxu0 0.0
        %298 = vmatprep.subr.mxu0 0.0
        %299 = vmatpush1.msra.mxu0 0.0
        %300 = vmatprep.subr.mxu0 0.0
        %301 = vmatpush1.msra.mxu0 0.0
        %302 = vmatprep.subr.mxu0 0.0
        %303 = vmatpush1.msra.mxu0 0.0
        %304 = vmatprep.subr.mxu0 0.0
        %305 = vmatpush1.msra.mxu0 0.0
        %306 = vmatprep.subr.mxu0 0.0
        %307 = vmatpush1.msra.mxu0 0.0
        %308 = vmatprep.subr.mxu0 0.0
        %309 = vmatpush1.msra.mxu0 0.0
        %310 = vmatprep.subr.mxu0 0.0
        %311 = vmatpush1.msra.mxu0 0.0
        %312 = vmatprep.subr.mxu0 0.0
        %313 = vmatpush1.msra.mxu0 0.0
        %314 = vmatprep.subr.mxu0 0.0
        %315 = vmatpush1.msra.mxu0 0.0
        %316 = vmatprep.subr.mxu0 0.0
        %317 = vmatpush1.msra.mxu0 0.0
        %318 = vmatprep.subr.mxu0 0.0
        %319 = vmatpush1.msra.mxu0 0.0
        %320 = vmatprep.subr.mxu0 0.0
        %321 = vmatpush1.msra.mxu0 0.0
        %322 = vmatprep.subr.mxu0 0.0
        %323 = vmatpush1.msra.mxu0 0.0
        %324 = vmatprep.subr.mxu0 0.0
        %325 = vmatpush1.msra.mxu0 0.0
        %326 = vmatprep.subr.mxu0 0.0
        %327 = vmatpush1.msra.mxu0 0.0
        %328 = vmatprep.subr.mxu0 0.0
        %329 = vmatpush1.msra.mxu0 0.0
        %330 = vmatprep.subr.mxu0 0.0
        %331 = vmatpush1.msra.mxu0 0.0
        %332 = vmatprep.subr.mxu0 0.0
        %333 = vmatpush1.msra.mxu0 0.0
        %334 = vmatprep.subr.mxu0 0.0
        %335 = vmatpush1.msra.mxu0 0.0
        %336 = vmatprep.subr.mxu0 0.0
        %337 = vmatpush1.msra.mxu0 0.0
        %338 = vmatprep.subr.mxu0 0.0
        %339 = vmatpush1.msra.mxu0 0.0
        %340 = vmatprep.subr.mxu0 0.0
        %341 = vmatpush1.msra.mxu0 0.0
        %342 = vmatprep.subr.mxu0 0.0
        %343 = vmatpush1.msra.mxu0 0.0
        %344 = vmatprep.subr.mxu0 0.0
        %345 = vmatpush1.msra.mxu0 0.0
        %346 = vmatprep.subr.mxu0 0.0
        %347 = vmatpush1.msra.mxu0 0.0
        %348 = vmatprep.subr.mxu0 0.0
        %349 = vmatpush1.msra.mxu0 0.0
        %350 = vmatprep.subr.mxu0 0.0
        %351 = vmatpush1.msra.mxu0 0.0
        %352 = vmatprep.subr.mxu0 0.0
        %353 = vmatpush1.msra.mxu0 0.0
        %354 = vmatprep.mubr.f32.mxu0 0.0
        %355 = vmatmul.mubr.f32.gmra.mrb[0].mxu0 %v187
        %v356 = vpop.f32.mrb[0].mxu0
        %v357 = vadd.f32 0.0, %v356
        %v358 = vpop.f32.mrb[0].mxu0
        %359 = vmatprep.mubr.f32.mxu0 0.0
        %360 = vmatmul.mubr.f32.gmra.mrb[0].mxu0 %v190
        %v361 = vpop.f32.mrb[0].mxu0
        %v362 = vadd.f32 0.0, %v361
        %v363 = vpop.f32.mrb[0].mxu0
        %364 = vmatprep.mubr.f32.mxu0 0.0
        %365 = vmatmul.mubr.f32.gmra.mrb[0].mxu0 %v193
        %v366 = vpop.f32.mrb[0].mxu0
        %v367 = vadd.f32 0.0, %v366
        %v368 = vpop.f32.mrb[0].mxu0
        %369 = vmatprep.mubr.f32.mxu0 0.0
        %370 = vmatmul.mubr.f32.gmra.mrb[0].mxu0 %v196
        %v371 = vpop.f32.mrb[0].mxu0
        %v372 = vadd.f32 0.0, %v371
        %v373 = vpop.f32.mrb[0].mxu0
        %374 = vdwg.mxu0
        %s375 = scalar_lea.vmem %s166, 32 [#allocation2]
        %376 = vst.msk [vmem:[%s375] sm:$0xff] %vm283, %v357
        %377 = vst.msk [vmem:[%s375 + $0x8] sm:$0xff] %vm283, %v362
        %378 = vst.msk [vmem:[%s375 + $0x10] sm:$0xff] %vm283, %v367
        %379 = vst.msk [vmem:[%s375 + $0x18] sm:$0xff] %vm283, %v372
        %v380 = vld [vmem:[%s171 + $0x20] sm:$0xff]
        %v381 = vld [vmem:[%s171 + $0x28] sm:$0xff]
        %382 = vmatprep.subr.mxu0 0.0
        %383 = vmatpush1.msra.mxu0 %v380
        %384 = vmatprep.subr.mxu0 0.0
        %385 = vmatpush1.msra.mxu0 %v381
        %386 = vmatprep.subr.mxu0 0.0
        %387 = vmatpush1.msra.mxu0 0.0
        %388 = vmatprep.subr.mxu0 0.0
        %389 = vmatpush1.msra.mxu0 0.0
        %390 = vmatprep.subr.mxu0 0.0
        %391 = vmatpush1.msra.mxu0 0.0
        %392 = vmatprep.subr.mxu0 0.0
        %393 = vmatpush1.msra.mxu0 0.0
        %394 = vmatprep.subr.mxu0 0.0
        %395 = vmatpush1.msra.mxu0 0.0
        %396 = vmatprep.subr.mxu0 0.0
        %397 = vmatpush1.msra.mxu0 0.0
        %398 = vmatprep.subr.mxu0 0.0
        %399 = vmatpush1.msra.mxu0 0.0
        %400 = vmatprep.subr.mxu0 0.0
        %401 = vmatpush1.msra.mxu0 0.0
        %402 = vmatprep.subr.mxu0 0.0
        %403 = vmatpush1.msra.mxu0 0.0
        %404 = vmatprep.subr.mxu0 0.0
        %405 = vmatpush1.msra.mxu0 0.0
        %406 = vmatprep.subr.mxu0 0.0
        %407 = vmatpush1.msra.mxu0 0.0
        %408 = vmatprep.subr.mxu0 0.0
        %409 = vmatpush1.msra.mxu0 0.0
        %410 = vmatprep.subr.mxu0 0.0
        %411 = vmatpush1.msra.mxu0 0.0
        %412 = vmatprep.subr.mxu0 0.0
        %413 = vmatpush1.msra.mxu0 0.0
        %414 = vmatprep.subr.mxu0 0.0
        %415 = vmatpush1.msra.mxu0 0.0
        %416 = vmatprep.subr.mxu0 0.0
        %417 = vmatpush1.msra.mxu0 0.0
        %418 = vmatprep.subr.mxu0 0.0
        %419 = vmatpush1.msra.mxu0 0.0
        %420 = vmatprep.subr.mxu0 0.0
        %421 = vmatpush1.msra.mxu0 0.0
        %422 = vmatprep.subr.mxu0 0.0
        %423 = vmatpush1.msra.mxu0 0.0
        %424 = vmatprep.subr.mxu0 0.0
        %425 = vmatpush1.msra.mxu0 0.0
        %426 = vmatprep.subr.mxu0 0.0
        %427 = vmatpush1.msra.mxu0 0.0
        %428 = vmatprep.subr.mxu0 0.0
        %429 = vmatpush1.msra.mxu0 0.0
        %430 = vmatprep.subr.mxu0 0.0
        %431 = vmatpush1.msra.mxu0 0.0
        %432 = vmatprep.subr.mxu0 0.0
        %433 = vmatpush1.msra.mxu0 0.0
        %434 = vmatprep.subr.mxu0 0.0
        %435 = vmatpush1.msra.mxu0 0.0
        %436 = vmatprep.subr.mxu0 0.0
        %437 = vmatpush1.msra.mxu0 0.0
        %438 = vmatprep.subr.mxu0 0.0
        %439 = vmatpush1.msra.mxu0 0.0
        %440 = vmatprep.subr.mxu0 0.0
        %441 = vmatpush1.msra.mxu0 0.0
        %442 = vmatprep.subr.mxu0 0.0
        %443 = vmatpush1.msra.mxu0 0.0
        %444 = vmatprep.subr.mxu0 0.0
        %445 = vmatpush1.msra.mxu0 0.0
        %446 = vmatprep.mubr.f32.mxu0 0.0
        %447 = vmatmul.mubr.f32.gmra.mrb[0].mxu0 %v187
        %v448 = vpop.f32.mrb[0].mxu0
        %v449 = vadd.f32 0.0, %v448
        %v450 = vpop.f32.mrb[0].mxu0
        %451 = vmatprep.mubr.f32.mxu0 0.0
        %452 = vmatmul.mubr.f32.gmra.mrb[0].mxu0 %v190
        %v453 = vpop.f32.mrb[0].mxu0
        %v454 = vadd.f32 0.0, %v453
        %v455 = vpop.f32.mrb[0].mxu0
        %456 = vmatprep.mubr.f32.mxu0 0.0
        %457 = vmatmul.mubr.f32.gmra.mrb[0].mxu0 %v193
        %v458 = vpop.f32.mrb[0].mxu0
        %v459 = vadd.f32 0.0, %v458
        %v460 = vpop.f32.mrb[0].mxu0
        %461 = vmatprep.mubr.f32.mxu0 0.0
        %462 = vmatmul.mubr.f32.gmra.mrb[0].mxu0 %v196
        %v463 = vpop.f32.mrb[0].mxu0
        %v464 = vadd.f32 0.0, %v463
        %v465 = vpop.f32.mrb[0].mxu0
        %466 = vdwg.mxu0
        %s467 = scalar_lea.vmem %s166, 64 [#allocation2]
        %468 = vst.msk [vmem:[%s467] sm:$0xff] %vm283, %v449
        %469 = vst.msk [vmem:[%s467 + $0x8] sm:$0xff] %vm283, %v454
        %470 = vst.msk [vmem:[%s467 + $0x10] sm:$0xff] %vm283, %v459
        %471 = vst.msk [vmem:[%s467 + $0x18] sm:$0xff] %vm283, %v464
        %v472 = vld [vmem:[%s171 + $0x30] sm:$0xff]
        %v473 = vld [vmem:[%s171 + $0x38] sm:$0xff]
        %474 = vmatprep.subr.mxu0 0.0
        %475 = vmatpush1.msra.mxu0 %v472
        %476 = vmatprep.subr.mxu0 0.0
        %477 = vmatpush1.msra.mxu0 %v473
        %478 = vmatprep.subr.mxu0 0.0
        %479 = vmatpush1.msra.mxu0 0.0
        %480 = vmatprep.subr.mxu0 0.0
        %481 = vmatpush1.msra.mxu0 0.0
        %482 = vmatprep.subr.mxu0 0.0
        %483 = vmatpush1.msra.mxu0 0.0
        %484 = vmatprep.subr.mxu0 0.0
        %485 = vmatpush1.msra.mxu0 0.0
        %486 = vmatprep.subr.mxu0 0.0
        %487 = vmatpush1.msra.mxu0 0.0
        %488 = vmatprep.subr.mxu0 0.0
        %489 = vmatpush1.msra.mxu0 0.0
        %490 = vmatprep.subr.mxu0 0.0
        %491 = vmatpush1.msra.mxu0 0.0
        %492 = vmatprep.subr.mxu0 0.0
        %493 = vmatpush1.msra.mxu0 0.0
        %494 = vmatprep.subr.mxu0 0.0
        %495 = vmatpush1.msra.mxu0 0.0
        %496 = vmatprep.subr.mxu0 0.0
        %497 = vmatpush1.msra.mxu0 0.0
        %498 = vmatprep.subr.mxu0 0.0
        %499 = vmatpush1.msra.mxu0 0.0
        %500 = vmatprep.subr.mxu0 0.0
        %501 = vmatpush1.msra.mxu0 0.0
        %502 = vmatprep.subr.mxu0 0.0
        %503 = vmatpush1.msra.mxu0 0.0
        %504 = vmatprep.subr.mxu0 0.0
        %505 = vmatpush1.msra.mxu0 0.0
        %506 = vmatprep.subr.mxu0 0.0
        %507 = vmatpush1.msra.mxu0 0.0
        %508 = vmatprep.subr.mxu0 0.0
        %509 = vmatpush1.msra.mxu0 0.0
        %510 = vmatprep.subr.mxu0 0.0
        %511 = vmatpush1.msra.mxu0 0.0
        %512 = vmatprep.subr.mxu0 0.0
        %513 = vmatpush1.msra.mxu0 0.0
        %514 = vmatprep.subr.mxu0 0.0
        %515 = vmatpush1.msra.mxu0 0.0
        %516 = vmatprep.subr.mxu0 0.0
        %517 = vmatpush1.msra.mxu0 0.0
        %518 = vmatprep.subr.mxu0 0.0
        %519 = vmatpush1.msra.mxu0 0.0
        %520 = vmatprep.subr.mxu0 0.0
        %521 = vmatpush1.msra.mxu0 0.0
        %522 = vmatprep.subr.mxu0 0.0
        %523 = vmatpush1.msra.mxu0 0.0
        %524 = vmatprep.subr.mxu0 0.0
        %525 = vmatpush1.msra.mxu0 0.0
        %526 = vmatprep.subr.mxu0 0.0
        %527 = vmatpush1.msra.mxu0 0.0
        %528 = vmatprep.subr.mxu0 0.0
        %529 = vmatpush1.msra.mxu0 0.0
        %530 = vmatprep.subr.mxu0 0.0
        %531 = vmatpush1.msra.mxu0 0.0
        %532 = vmatprep.subr.mxu0 0.0
        %533 = vmatpush1.msra.mxu0 0.0
        %534 = vmatprep.subr.mxu0 0.0
        %535 = vmatpush1.msra.mxu0 0.0
        %536 = vmatprep.subr.mxu0 0.0
        %537 = vmatpush1.msra.mxu0 0.0
        %538 = vmatprep.mubr.f32.mxu0 0.0
        %539 = vmatmul.mubr.f32.gmra.mrb[0].mxu0 %v187
        %v540 = vpop.f32.mrb[0].mxu0
        %v541 = vadd.f32 0.0, %v540
        %v542 = vpop.f32.mrb[0].mxu0
        %543 = vmatprep.mubr.f32.mxu0 0.0
        %544 = vmatmul.mubr.f32.gmra.mrb[0].mxu0 %v190
        %v545 = vpop.f32.mrb[0].mxu0
        %v546 = vadd.f32 0.0, %v545
        %v547 = vpop.f32.mrb[0].mxu0
        %548 = vmatprep.mubr.f32.mxu0 0.0
        %549 = vmatmul.mubr.f32.gmra.mrb[0].mxu0 %v193
        %v550 = vpop.f32.mrb[0].mxu0
        %v551 = vadd.f32 0.0, %v550
        %v552 = vpop.f32.mrb[0].mxu0
        %553 = vmatprep.mubr.f32.mxu0 0.0
        %554 = vmatmul.mubr.f32.gmra.mrb[0].mxu0 %v196
        %v555 = vpop.f32.mrb[0].mxu0
        %v556 = vadd.f32 0.0, %v555
        %v557 = vpop.f32.mrb[0].mxu0
        %558 = vdwg.mxu0
        %s559 = scalar_lea.vmem %s166, 96 [#allocation2]
        %560 = vst.msk [vmem:[%s559] sm:$0xff] %vm283, %v541
        %561 = vst.msk [vmem:[%s559 + $0x8] sm:$0xff] %vm283, %v546
        %562 = vst.msk [vmem:[%s559 + $0x10] sm:$0xff] %vm283, %v551
        %563 = vst.msk [vmem:[%s559 + $0x18] sm:$0xff] %vm283, %v556
        %v564 = vld [vmem:[%s171 + $0x40] sm:$0xff]
        %v565 = vld [vmem:[%s171 + $0x48] sm:$0xff]
        %566 = vmatprep.subr.mxu0 0.0
        %567 = vmatpush1.msra.mxu0 %v564
        %568 = vmatprep.subr.mxu0 0.0
        %569 = vmatpush1.msra.mxu0 %v565
        %570 = vmatprep.subr.mxu0 0.0
        %571 = vmatpush1.msra.mxu0 0.0
        %572 = vmatprep.subr.mxu0 0.0
        %573 = vmatpush1.msra.mxu0 0.0
        %574 = vmatprep.subr.mxu0 0.0
        %575 = vmatpush1.msra.mxu0 0.0
        %576 = vmatprep.subr.mxu0 0.0
        %577 = vmatpush1.msra.mxu0 0.0
        %578 = vmatprep.subr.mxu0 0.0
        %579 = vmatpush1.msra.mxu0 0.0
        %580 = vmatprep.subr.mxu0 0.0
        %581 = vmatpush1.msra.mxu0 0.0
        %582 = vmatprep.subr.mxu0 0.0
        %583 = vmatpush1.msra.mxu0 0.0
        %584 = vmatprep.subr.mxu0 0.0
        %585 = vmatpush1.msra.mxu0 0.0
        %586 = vmatprep.subr.mxu0 0.0
        %587 = vmatpush1.msra.mxu0 0.0
        %588 = vmatprep.subr.mxu0 0.0
        %589 = vmatpush1.msra.mxu0 0.0
        %590 = vmatprep.subr.mxu0 0.0
        %591 = vmatpush1.msra.mxu0 0.0
        %592 = vmatprep.subr.mxu0 0.0
        %593 = vmatpush1.msra.mxu0 0.0
        %594 = vmatprep.subr.mxu0 0.0
        %595 = vmatpush1.msra.mxu0 0.0
        %596 = vmatprep.subr.mxu0 0.0
        %597 = vmatpush1.msra.mxu0 0.0
        %598 = vmatprep.subr.mxu0 0.0
        %599 = vmatpush1.msra.mxu0 0.0
        %600 = vmatprep.subr.mxu0 0.0
        %601 = vmatpush1.msra.mxu0 0.0
        %602 = vmatprep.subr.mxu0 0.0
        %603 = vmatpush1.msra.mxu0 0.0
        %604 = vmatprep.subr.mxu0 0.0
        %605 = vmatpush1.msra.mxu0 0.0
        %606 = vmatprep.subr.mxu0 0.0
        %607 = vmatpush1.msra.mxu0 0.0
        %608 = vmatprep.subr.mxu0 0.0
        %609 = vmatpush1.msra.mxu0 0.0
        %610 = vmatprep.subr.mxu0 0.0
        %611 = vmatpush1.msra.mxu0 0.0
        %612 = vmatprep.subr.mxu0 0.0
        %613 = vmatpush1.msra.mxu0 0.0
        %614 = vmatprep.subr.mxu0 0.0
        %615 = vmatpush1.msra.mxu0 0.0
        %616 = vmatprep.subr.mxu0 0.0
        %617 = vmatpush1.msra.mxu0 0.0
        %618 = vmatprep.subr.mxu0 0.0
        %619 = vmatpush1.msra.mxu0 0.0
        %620 = vmatprep.subr.mxu0 0.0
        %621 = vmatpush1.msra.mxu0 0.0
        %622 = vmatprep.subr.mxu0 0.0
        %623 = vmatpush1.msra.mxu0 0.0
        %624 = vmatprep.subr.mxu0 0.0
        %625 = vmatpush1.msra.mxu0 0.0
        %626 = vmatprep.subr.mxu0 0.0
        %627 = vmatpush1.msra.mxu0 0.0
        %628 = vmatprep.subr.mxu0 0.0
        %629 = vmatpush1.msra.mxu0 0.0
        %630 = vmatprep.mubr.f32.mxu0 0.0
        %631 = vmatmul.mubr.f32.gmra.mrb[0].mxu0 %v187
        %v632 = vpop.f32.mrb[0].mxu0
        %v633 = vadd.f32 0.0, %v632
        %v634 = vpop.f32.mrb[0].mxu0
        %635 = vmatprep.mubr.f32.mxu0 0.0
        %636 = vmatmul.mubr.f32.gmra.mrb[0].mxu0 %v190
        %v637 = vpop.f32.mrb[0].mxu0
        %v638 = vadd.f32 0.0, %v637
        %v639 = vpop.f32.mrb[0].mxu0
        %640 = vmatprep.mubr.f32.mxu0 0.0
        %641 = vmatmul.mubr.f32.gmra.mrb[0].mxu0 %v193
        %v642 = vpop.f32.mrb[0].mxu0
        %v643 = vadd.f32 0.0, %v642
        %v644 = vpop.f32.mrb[0].mxu0
        %645 = vmatprep.mubr.f32.mxu0 0.0
        %646 = vmatmul.mubr.f32.gmra.mrb[0].mxu0 %v196
        %v647 = vpop.f32.mrb[0].mxu0
        %v648 = vadd.f32 0.0, %v647
        %v649 = vpop.f32.mrb[0].mxu0
        %650 = vdwg.mxu0
        %s651 = scalar_lea.vmem %s166, 128 [#allocation2]
        %652 = vst.msk [vmem:[%s651] sm:$0xff] %vm283, %v633
        %653 = vst.msk [vmem:[%s651 + $0x8] sm:$0xff] %vm283, %v638
        %654 = vst.msk [vmem:[%s651 + $0x10] sm:$0xff] %vm283, %v643
        %655 = vst.msk [vmem:[%s651 + $0x18] sm:$0xff] %vm283, %v648
        %v656 = vld [vmem:[%s171 + $0x50] sm:$0xff]
        %v657 = vld [vmem:[%s171 + $0x58] sm:$0xff]
        %658 = vmatprep.subr.mxu0 0.0
        %659 = vmatpush1.msra.mxu0 %v656
        %660 = vmatprep.subr.mxu0 0.0
        %661 = vmatpush1.msra.mxu0 %v657
        %662 = vmatprep.subr.mxu0 0.0
        %663 = vmatpush1.msra.mxu0 0.0
        %664 = vmatprep.subr.mxu0 0.0
        %665 = vmatpush1.msra.mxu0 0.0
        %666 = vmatprep.subr.mxu0 0.0
        %667 = vmatpush1.msra.mxu0 0.0
        %668 = vmatprep.subr.mxu0 0.0
        %669 = vmatpush1.msra.mxu0 0.0
        %670 = vmatprep.subr.mxu0 0.0
        %671 = vmatpush1.msra.mxu0 0.0
        %672 = vmatprep.subr.mxu0 0.0
        %673 = vmatpush1.msra.mxu0 0.0
        %674 = vmatprep.subr.mxu0 0.0
        %675 = vmatpush1.msra.mxu0 0.0
        %676 = vmatprep.subr.mxu0 0.0
        %677 = vmatpush1.msra.mxu0 0.0
        %678 = vmatprep.subr.mxu0 0.0
        %679 = vmatpush1.msra.mxu0 0.0
        %680 = vmatprep.subr.mxu0 0.0
        %681 = vmatpush1.msra.mxu0 0.0
        %682 = vmatprep.subr.mxu0 0.0
        %683 = vmatpush1.msra.mxu0 0.0
        %684 = vmatprep.subr.mxu0 0.0
        %685 = vmatpush1.msra.mxu0 0.0
        %686 = vmatprep.subr.mxu0 0.0
        %687 = vmatpush1.msra.mxu0 0.0
        %688 = vmatprep.subr.mxu0 0.0
        %689 = vmatpush1.msra.mxu0 0.0
        %690 = vmatprep.subr.mxu0 0.0
        %691 = vmatpush1.msra.mxu0 0.0
        %692 = vmatprep.subr.mxu0 0.0
        %693 = vmatpush1.msra.mxu0 0.0
        %694 = vmatprep.subr.mxu0 0.0
        %695 = vmatpush1.msra.mxu0 0.0
        %696 = vmatprep.subr.mxu0 0.0
        %697 = vmatpush1.msra.mxu0 0.0
        %698 = vmatprep.subr.mxu0 0.0
        %699 = vmatpush1.msra.mxu0 0.0
        %700 = vmatprep.subr.mxu0 0.0
        %701 = vmatpush1.msra.mxu0 0.0
        %702 = vmatprep.subr.mxu0 0.0
        %703 = vmatpush1.msra.mxu0 0.0
        %704 = vmatprep.subr.mxu0 0.0
        %705 = vmatpush1.msra.mxu0 0.0
        %706 = vmatprep.subr.mxu0 0.0
        %707 = vmatpush1.msra.mxu0 0.0
        %708 = vmatprep.subr.mxu0 0.0
        %709 = vmatpush1.msra.mxu0 0.0
        %710 = vmatprep.subr.mxu0 0.0
        %711 = vmatpush1.msra.mxu0 0.0
        %712 = vmatprep.subr.mxu0 0.0
        %713 = vmatpush1.msra.mxu0 0.0
        %714 = vmatprep.subr.mxu0 0.0
        %715 = vmatpush1.msra.mxu0 0.0
        %716 = vmatprep.subr.mxu0 0.0
        %717 = vmatpush1.msra.mxu0 0.0
        %718 = vmatprep.subr.mxu0 0.0
        %719 = vmatpush1.msra.mxu0 0.0
        %720 = vmatprep.subr.mxu0 0.0
        %721 = vmatpush1.msra.mxu0 0.0
        %722 = vmatprep.mubr.f32.mxu0 0.0
        %723 = vmatmul.mubr.f32.gmra.mrb[0].mxu0 %v187
        %v724 = vpop.f32.mrb[0].mxu0
        %v725 = vadd.f32 0.0, %v724
        %v726 = vpop.f32.mrb[0].mxu0
        %727 = vmatprep.mubr.f32.mxu0 0.0
        %728 = vmatmul.mubr.f32.gmra.mrb[0].mxu0 %v190
        %v729 = vpop.f32.mrb[0].mxu0
        %v730 = vadd.f32 0.0, %v729
        %v731 = vpop.f32.mrb[0].mxu0
        %732 = vmatprep.mubr.f32.mxu0 0.0
        %733 = vmatmul.mubr.f32.gmra.mrb[0].mxu0 %v193
        %v734 = vpop.f32.mrb[0].mxu0
        %v735 = vadd.f32 0.0, %v734
        %v736 = vpop.f32.mrb[0].mxu0
        %737 = vmatprep.mubr.f32.mxu0 0.0
        %738 = vmatmul.mubr.f32.gmra.mrb[0].mxu0 %v196
        %v739 = vpop.f32.mrb[0].mxu0
        %v740 = vadd.f32 0.0, %v739
        %v741 = vpop.f32.mrb[0].mxu0
        %742 = vdwg.mxu0
        %s743 = scalar_lea.vmem %s166, 160 [#allocation2]
        %744 = vst.msk [vmem:[%s743] sm:$0xff] %vm283, %v725
        %745 = vst.msk [vmem:[%s743 + $0x8] sm:$0xff] %vm283, %v730
        %746 = vst.msk [vmem:[%s743 + $0x10] sm:$0xff] %vm283, %v735
        %747 = vst.msk [vmem:[%s743 + $0x18] sm:$0xff] %vm283, %v740
        %s748 = sand.u32 %s90, 1
        %s749 = scalar_lea.sflag [#allocation3], %s748
        %s750 = sand.u32 %s90, 1
        %s751 = smul.addr %s750, 192
        %s752 = scalar_lea.vmem [#allocation2], %s751
        // Predicated region
        $region29: #{_pse_head_forward_impl.5} parent=27 // pred_check
          %p753 = pneg %p100
        $region30: #{_pse_head_forward_impl.5} parent=27 // pred_check_branch
          %755 = sbr.rel (%p753) target = $region32
        $region31: #{_pse_head_forward_impl.5} parent=27 // pred_region
          %s756 = smul.u32 4, %s21
          %s758 = ssub.s32 3072, 3072
          %759 = vsyncadd %s749, %s758
          %s760 = smul.addr %s20, 24
          %s761 = sadd.s32 %s756, %s760
          %s762 = smul.addr %s761, 128
          %s763 = scalar_lea.hbm %s2, %s762
          %s764 = sshll.u32 %s752, 4
          %s765 = int_to_ptr.vmem [resolvable:$true] %s764
          %770 = dma.vmem_to_hbm [thread:$0]  %s765, 3072, %s763, %s749, 128, 128, 8
        $region32: #{_pse_head_forward_impl.5} parent=27 // pred_fallthru
          _
      $region28: #{_pse_head_forward_impl.5} parent=5 // pred_fallthru
        _
      %p771 = scmp.le.s32.totalorder 2, %s11
      // Predicated region
      $region33: #{_pse_head_forward_impl.5} parent=5 // pred_check
        %p772 = pneg %p771
      $region34: #{_pse_head_forward_impl.5} parent=5 // pred_check_branch
        %774 = sbr.rel (%p772) target = $region36
      $region35: #{_pse_head_forward_impl.5} parent=5 // pred_region
        %s775 = ssub.s32 %s11, 2
        // Predicated region
        $region37: #{_pse_head_forward_impl.5} parent=35 // pred_check
          %p776 = pneg %p106
        $region38: #{_pse_head_forward_impl.5} parent=35 // pred_check_branch
          %778 = sbr.rel (%p776) target = $region40
        $region39: #{_pse_head_forward_impl.5} parent=35 // pred_region
          %s779 = sand.u32 %s91, 1
          %s780 = scalar_lea.sflag [#allocation3], %s779
          %s781 = sand.u32 %s91, 1
          %s782 = smul.addr %s781, 192
          %s783 = scalar_lea.vmem [#allocation2], %s782
          %784 = dma.done %s780, 3072
        $region40: #{_pse_head_forward_impl.5} parent=35 // pred_fallthru
          _
      $region36: #{_pse_head_forward_impl.5} parent=5 // pred_fallthru
        _
    $region6: #{_pse_head_forward_impl.5} parent=1 // loop_footer
      %s15 = sadd.s32 1, %s11
    $region7: #{_pse_head_forward_impl.5} parent=1 // loop_footer_branch
      %10 = sbr.rel target = $region3
    $region8: #{_pse_head_forward_impl.5} parent=1 // loop_exit
      _
    %785 = vsyncpa [#allocation3], 1
    %s786 = scalar_lea.sflag [#allocation3], 1
    %787 = vsyncpa %s786, 1

// kernel: _pse_head_forward_impl.4
$region0: #{_pse_head_forward_impl.4}
  #allocation0 [shape = 'u32[]', space=smem, size = 0x4, offset = 0x4, fixed_abs, tag = 'smem constant byte address 0x4 - core index']
  #allocation1 [shape = 'u32[144,128]{1,0:T(1,128)}', space=vmem, size = 0x12000, scoped, tag = 'internal scratch']
  %s0 = inlined_call_operand.vmem [shape: f32[2,96,16], index: 0, kind: input, shape index: {}]
  %s1 = inlined_call_operand.vmem [shape: f32[16,32], index: 1, kind: input, shape index: {}]
  %s2 = inlined_call_operand.vmem [shape: f32[2,96,32], index: 2, kind: output, shape index: {}]
  %s3 = sld [smem:[#allocation0]]
  $region41: #{_pse_head_forward_impl.4} parent=0
    _
  %s5 = ssub.s32 1, %s3
  %s6 = scalar_select 0, %s5, %s3
  loop: start=0, step=1, limit=4
  $region2: #{_pse_head_forward_impl.4} parent=0 // loop_pre_header
    _
  $region3: #{_pse_head_forward_impl.4} parent=0 // loop_header
    %s8 = sphi 0, %s12
    %p9 = scmp.ge.s32.totalorder %s8, 4
    %s15 = sphi 0, %s27
    %s16 = sphi 0, %s23
    %s17 = sphi 0, %s15
    %s18 = sphi 0, %s16
    %s19 = sphi 0, %s17
    %s20 = sphi 0, %s18
    %s32 = sphi 0, %s34
    %s35 = sphi 0, %s32
    %s36 = sphi 0, %s35
    %s52 = sphi 0, %s36
    %s56 = sphi 0, %s56
    %s58 = sphi 0, %s56
    %s59 = sphi 0, %s58
    %s73 = sphi 0, %s59
    %s81 = sphi 0, %s83
    %s84 = sphi 0, %s81
    %s85 = sphi 0, %s84
    %s101 = sphi 0, %s85
  $region4: #{_pse_head_forward_impl.4} parent=0 // loop_header_branch
    %11 = sbr.rel (%p9) target = $region8
  $region5: #{_pse_head_forward_impl.4} parent=0 // loop_body
    %s13 = ssub.s32 %s8, 1
    %s14 = ssub.s32 %s8, 2
    %s21 = sadd.s32 1, %s16
    %p22 = scmp.ge.s32.totalorder %s21, 1
    %s23 = scalar_select %p22, 0, %s21
    %s24 = sadd.s32 1, %s15
    %s25 = scalar_select %p22, %s24, %s15
    %p26 = scmp.ge.s32.totalorder %s25, 2
    %s27 = scalar_select %p26, 0, %s25
    %s28 = ssub.s32 %s15, %s27
    %s29 = ssub.s32 %s16, %s23
    %s30 = sor.u32 %s28, %s29
    %p31 = scmp.eq.s32.totalorder %s30, 0
    %s33 = sadd.s32 %s32, 1
    %s34 = scalar_select %p31, %s32, %s33
    %p37 = pneg %p31
    %p38 = scmp.eq.s32.totalorder %s8, 1
    %p39 = por %p37, %p38
    %p40 = scmp.ne.s32.totalorder %s32, %s35
    %p41 = scmp.eq.s32.totalorder %s8, 0
    %p42 = por %p40, %p41
    %p43 = scmp.ne.s32.totalorder %s32, %s35
    %p44 = scmp.eq.s32.totalorder %s13, 1
    %p45 = por %p43, %p44
    %p46 = scmp.ne.s32.totalorder %s35, %s36
    %p47 = scmp.eq.s32.totalorder %s13, 0
    %p48 = por %p46, %p47
    %p49 = scmp.ne.s32.totalorder %s35, %s36
    %p50 = scmp.eq.s32.totalorder %s14, 1
    %p51 = por %p49, %p50
    %p53 = scmp.ne.s32.totalorder %s36, %s52
    %p54 = scmp.eq.s32.totalorder %s14, 0
    %p55 = por %p53, %p54
    %s57 = sadd.s32 %s56, 1
    %p60 = scmp.eq.s32.totalorder %s8, 1
    %p61 = scmp.ne.s32.totalorder %s56, %s58
    %p62 = scmp.eq.s32.totalorder %s8, 0
    %p63 = por %p61, %p62
    %p64 = scmp.ne.s32.totalorder %s56, %s58
    %p65 = scmp.eq.s32.totalorder %s13, 1
    %p66 = por %p64, %p65
    %p67 = scmp.ne.s32.totalorder %s58, %s59
    %p68 = scmp.eq.s32.totalorder %s13, 0
    %p69 = por %p67, %p68
    %p70 = scmp.ne.s32.totalorder %s58, %s59
    %p71 = scmp.eq.s32.totalorder %s14, 1
    %p72 = por %p70, %p71
    %p74 = scmp.ne.s32.totalorder %s59, %s73
    %p75 = scmp.eq.s32.totalorder %s14, 0
    %p76 = por %p74, %p75
    %s77 = ssub.s32 %s15, %s27
    %s78 = ssub.s32 %s16, %s23
    %s79 = sor.u32 %s77, %s78
    %p80 = scmp.eq.s32.totalorder %s79, 0
    %s82 = sadd.s32 %s81, 1
    %s83 = scalar_select %p80, %s81, %s82
    %p86 = pneg %p80
    %p87 = scmp.eq.s32.totalorder %s8, 1
    %p88 = por %p86, %p87
    %p89 = scmp.ne.s32.totalorder %s81, %s84
    %p90 = scmp.eq.s32.totalorder %s8, 0
    %p91 = por %p89, %p90
    %p92 = scmp.ne.s32.totalorder %s81, %s84
    %p93 = scmp.eq.s32.totalorder %s13, 1
    %p94 = por %p92, %p93
    %p95 = scmp.ne.s32.totalorder %s84, %s85
    %p96 = scmp.eq.s32.totalorder %s13, 0
    %p97 = por %p95, %p96
    %p98 = scmp.ne.s32.totalorder %s84, %s85
    %p99 = scmp.eq.s32.totalorder %s14, 1
    %p100 = por %p98, %p99
    %p102 = scmp.ne.s32.totalorder %s85, %s101
    %p103 = scmp.eq.s32.totalorder %s14, 0
    %p104 = por %p102, %p103
    %p105 = scmp.le.s32.totalorder 1, %s8
    %p106 = scmp.lt.s32.totalorder %s8, 3
    %p107 = pnand %p105, %p106
    %p108 = pneg %p107
    // Predicated region
    $region9: #{_pse_head_forward_impl.4} parent=5 // pred_check
      _
    $region10: #{_pse_head_forward_impl.4} parent=5 // pred_check_branch
      %110 = sbr.rel (%p107) target = $region12
    $region11: #{_pse_head_forward_impl.4} parent=5 // pred_region
      %s111 = ssub.s32 %s8, 1
      // Predicated region
      $region13: #{_pse_head_forward_impl.4} parent=11 // pred_check
        %p112 = pneg %p69
      $region14: #{_pse_head_forward_impl.4} parent=11 // pred_check_branch
        %114 = sbr.rel (%p112) target = $region16
      $region15: #{_pse_head_forward_impl.4} parent=11 // pred_region
        _
      $region16: #{_pse_head_forward_impl.4} parent=11 // pred_fallthru
        _
    $region12: #{_pse_head_forward_impl.4} parent=5 // pred_fallthru
      _
    %p115 = scmp.lt.s32.totalorder %s8, 2
    // Predicated region
    $region17: #{_pse_head_forward_impl.4} parent=5 // pred_check
      %p116 = pneg %p115
    $region18: #{_pse_head_forward_impl.4} parent=5 // pred_check_branch
      %118 = sbr.rel (%p116) target = $region20
    $region19: #{_pse_head_forward_impl.4} parent=5 // pred_region
      // Predicated region
      $region21: #{_pse_head_forward_impl.4} parent=19 // pred_check
        %p119 = pneg %p42
      $region22: #{_pse_head_forward_impl.4} parent=19 // pred_check_branch
        %121 = sbr.rel (%p119) target = $region24
      $region23: #{_pse_head_forward_impl.4} parent=19 // pred_region
        %s122 = smul.u32 12, %s16
        %p123 = scmp.lt.s32.totalorder %s15, 1
        %s124 = scalar_select %p123, %s15, 1
        %p125 = scmp.lt.s32.totalorder %s122, 11
        %s126 = scalar_select %p125, %s122, 11
        %s127 = smul.addr %s124, 12
        %s128 = sadd.s32 %s126, %s127
        %s129 = smul.addr %s128, 8
        %s130 = scalar_lea.vmem %s0, %s129
        %s131 = smul.u32 12, %s16
      $region24: #{_pse_head_forward_impl.4} parent=19 // pred_fallthru
        _
    $region20: #{_pse_head_forward_impl.4} parent=5 // pred_fallthru
      _
    %p132 = scmp.le.s32.totalorder 1, %s8
    %p133 = scmp.lt.s32.totalorder %s8, 3
    %p134 = pnand %p132, %p133
    %p135 = pneg %p134
    // Predicated region
    $region25: #{_pse_head_forward_impl.4} parent=5 // pred_check
      _
    $region26: #{_pse_head_forward_impl.4} parent=5 // pred_check_branch
      %137 = sbr.rel (%p134) target = $region28
    $region27: #{_pse_head_forward_impl.4} parent=5 // pred_region
      %s138 = ssub.s32 %s8, 1
      %s139 = smul.u32 12, %s18
      %p140 = scmp.lt.s32.totalorder %s17, 1
      %s141 = scalar_select %p140, %s17, 1
      %p142 = scmp.lt.s32.totalorder %s139, 11
      %s143 = scalar_select %p142, %s139, 11
      %s144 = smul.addr %s141, 12
      %s145 = sadd.s32 %s143, %s144
      %s146 = smul.addr %s145, 8
      %s147 = scalar_lea.vmem %s0, %s146
      %p148 = pneg %p48
      %p149 = pneg %p45
      %p150 = pneg %p69
      %p151 = pneg %p66
      %p152 = pneg %p97
      %p153 = pneg %p94
      %s154 = smul.u32 12, %s18
      %p155 = scmp.lt.s32.totalorder %s17, 1
      %s156 = scalar_select %p155, %s17, 1
      %p157 = scmp.lt.s32.totalorder %s154, 11
      %s158 = scalar_select %p157, %s154, 11
      %s159 = smul.addr %s156, 12
      %s160 = sadd.s32 %s158, %s159
      %s161 = smul.addr %s160, 8
      %s162 = scalar_lea.vmem %s2, %s161
      %s163 = smul.u32 12, %s18
      %p164 = scmp.lt.s32.totalorder %s17, 1
      %s165 = scalar_select %p164, %s17, 1
      %p166 = scmp.lt.s32.totalorder %s163, 11
      %s167 = scalar_select %p166, %s163, 11
      %s168 = smul.addr %s165, 12
      %s169 = sadd.s32 %s167, %s168
      %s170 = smul.addr %s169, 8
      %s171 = scalar_lea.vmem %s0, %s170
      %s172 = smul.u32 12, %s18
      %s173 = smul.u32 12, %s18
      %p174 = scmp.lt.s32.totalorder %s17, 1
      %s175 = scalar_select %p174, %s17, 1
      %p176 = scmp.lt.s32.totalorder %s173, 11
      %s177 = scalar_select %p176, %s173, 11
      %s178 = smul.addr %s175, 12
      %s179 = sadd.s32 %s177, %s178
      %s180 = smul.addr %s179, 8
      %s181 = scalar_lea.vmem %s2, %s180
      %s182 = smul.u32 12, %s18
      %v183 = vld [vmem:[%s171] sm:$0xff]
      %v184 = vld [vmem:[%s171 + $0x8] sm:$0xff]
      %v185 = vld [vmem:[%s171 + $0x10] sm:$0xff]
      %v186 = vld [vmem:[%s171 + $0x18] sm:$0xff]
      %v187 = vld [vmem:[%s171 + $0x20] sm:$0xff]
      %v188 = vld [vmem:[%s171 + $0x28] sm:$0xff]
      %v189 = vld [vmem:[%s171 + $0x30] sm:$0xff]
      %v190 = vld [vmem:[%s171 + $0x38] sm:$0xff]
      %v191 = vld [vmem:[%s171 + $0x40] sm:$0xff]
      %v192 = vld [vmem:[%s171 + $0x48] sm:$0xff]
      %v193 = vld [vmem:[%s171 + $0x50] sm:$0xff]
      %v194 = vld [vmem:[%s171 + $0x58] sm:$0xff]
      %v195 = vld [vmem:[%s1] sm:$0xff]
      %v196 = vld [vmem:[%s1 + $0x8] sm:$0xff]
      %vm197 = vcmask 130048
      %v199 = vsel %vm197, %v183, 0
      %v202 = vsel %vm197, %v184, 0
      %v205 = vsel %vm197, %v185, 0
      %v208 = vsel %vm197, %v186, 0
      %v211 = vsel %vm197, %v187, 0
      %v214 = vsel %vm197, %v188, 0
      %v217 = vsel %vm197, %v189, 0
      %v220 = vsel %vm197, %v190, 0
      %v223 = vsel %vm197, %v191, 0
      %v226 = vsel %vm197, %v192, 0
      %v229 = vsel %vm197, %v193, 0
      %v232 = vsel %vm197, %v194, 0
      %234 = vmatprep.subr.mxu0 0.0
      %235 = vmatpush1.msra.mxu0 %v195
      %236 = vmatprep.subr.mxu0 0.0
      %237 = vmatpush1.msra.mxu0 %v196
      %238 = vmatprep.subr.mxu0 0.0
      %239 = vmatpush1.msra.mxu0 0.0
      %240 = vmatprep.subr.mxu0 0.0
      %241 = vmatpush1.msra.mxu0 0.0
      %242 = vmatprep.subr.mxu0 0.0
      %243 = vmatpush1.msra.mxu0 0.0
      %244 = vmatprep.subr.mxu0 0.0
      %245 = vmatpush1.msra.mxu0 0.0
      %246 = vmatprep.subr.mxu0 0.0
      %247 = vmatpush1.msra.mxu0 0.0
      %248 = vmatprep.subr.mxu0 0.0
      %249 = vmatpush1.msra.mxu0 0.0
      %250 = vmatprep.subr.mxu0 0.0
      %251 = vmatpush1.msra.mxu0 0.0
      %252 = vmatprep.subr.mxu0 0.0
      %253 = vmatpush1.msra.mxu0 0.0
      %254 = vmatprep.subr.mxu0 0.0
      %255 = vmatpush1.msra.mxu0 0.0
      %256 = vmatprep.subr.mxu0 0.0
      %257 = vmatpush1.msra.mxu0 0.0
      %258 = vmatprep.subr.mxu0 0.0
      %259 = vmatpush1.msra.mxu0 0.0
      %260 = vmatprep.subr.mxu0 0.0
      %261 = vmatpush1.msra.mxu0 0.0
      %262 = vmatprep.subr.mxu0 0.0
      %263 = vmatpush1.msra.mxu0 0.0
      %264 = vmatprep.subr.mxu0 0.0
      %265 = vmatpush1.msra.mxu0 0.0
      %266 = vmatprep.subr.mxu0 0.0
      %267 = vmatpush1.msra.mxu0 0.0
      %268 = vmatprep.subr.mxu0 0.0
      %269 = vmatpush1.msra.mxu0 0.0
      %270 = vmatprep.subr.mxu0 0.0
      %271 = vmatpush1.msra.mxu0 0.0
      %272 = vmatprep.subr.mxu0 0.0
      %273 = vmatpush1.msra.mxu0 0.0
      %274 = vmatprep.subr.mxu0 0.0
      %275 = vmatpush1.msra.mxu0 0.0
      %276 = vmatprep.subr.mxu0 0.0
      %277 = vmatpush1.msra.mxu0 0.0
      %278 = vmatprep.subr.mxu0 0.0
      %279 = vmatpush1.msra.mxu0 0.0
      %280 = vmatprep.subr.mxu0 0.0
      %281 = vmatpush1.msra.mxu0 0.0
      %282 = vmatprep.subr.mxu0 0.0
      %283 = vmatpush1.msra.mxu0 0.0
      %284 = vmatprep.subr.mxu0 0.0
      %285 = vmatpush1.msra.mxu0 0.0
      %286 = vmatprep.subr.mxu0 0.0
      %287 = vmatpush1.msra.mxu0 0.0
      %288 = vmatprep.subr.mxu0 0.0
      %289 = vmatpush1.msra.mxu0 0.0
      %290 = vmatprep.subr.mxu0 0.0
      %291 = vmatpush1.msra.mxu0 0.0
      %292 = vmatprep.subr.mxu0 0.0
      %293 = vmatpush1.msra.mxu0 0.0
      %294 = vmatprep.subr.mxu0 0.0
      %295 = vmatpush1.msra.mxu0 0.0
      %296 = vmatprep.subr.mxu0 0.0
      %297 = vmatpush1.msra.mxu0 0.0
      %298 = vmatprep.mubr.f32.mxu0 0.0
      %299 = vmatmul.mubr.f32.gmra.mrb[0].mxu0 %v199
      %v300 = vpop.f32.mrb[0].mxu0
      %v301 = vadd.f32 0.0, %v300
      %v302 = vpop.f32.mrb[0].mxu0
      %303 = vmatprep.mubr.f32.mxu0 0.0
      %304 = vmatmul.mubr.f32.gmra.mrb[0].mxu0 %v202
      %v305 = vpop.f32.mrb[0].mxu0
      %v306 = vadd.f32 0.0, %v305
      %v307 = vpop.f32.mrb[0].mxu0
      %308 = vmatprep.mubr.f32.mxu0 0.0
      %309 = vmatmul.mubr.f32.gmra.mrb[0].mxu0 %v205
      %v310 = vpop.f32.mrb[0].mxu0
      %v311 = vadd.f32 0.0, %v310
      %v312 = vpop.f32.mrb[0].mxu0
      %313 = vmatprep.mubr.f32.mxu0 0.0
      %314 = vmatmul.mubr.f32.gmra.mrb[0].mxu0 %v208
      %v315 = vpop.f32.mrb[0].mxu0
      %v316 = vadd.f32 0.0, %v315
      %v317 = vpop.f32.mrb[0].mxu0
      %318 = vmatprep.mubr.f32.mxu0 0.0
      %319 = vmatmul.mubr.f32.gmra.mrb[0].mxu0 %v211
      %v320 = vpop.f32.mrb[0].mxu0
      %v321 = vadd.f32 0.0, %v320
      %v322 = vpop.f32.mrb[0].mxu0
      %323 = vmatprep.mubr.f32.mxu0 0.0
      %324 = vmatmul.mubr.f32.gmra.mrb[0].mxu0 %v214
      %v325 = vpop.f32.mrb[0].mxu0
      %v326 = vadd.f32 0.0, %v325
      %v327 = vpop.f32.mrb[0].mxu0
      %328 = vmatprep.mubr.f32.mxu0 0.0
      %329 = vmatmul.mubr.f32.gmra.mrb[0].mxu0 %v217
      %v330 = vpop.f32.mrb[0].mxu0
      %v331 = vadd.f32 0.0, %v330
      %v332 = vpop.f32.mrb[0].mxu0
      %333 = vmatprep.mubr.f32.mxu0 0.0
      %334 = vmatmul.mubr.f32.gmra.mrb[0].mxu0 %v220
      %v335 = vpop.f32.mrb[0].mxu0
      %v336 = vadd.f32 0.0, %v335
      %v337 = vpop.f32.mrb[0].mxu0
      %338 = vmatprep.mubr.f32.mxu0 0.0
      %339 = vmatmul.mubr.f32.gmra.mrb[0].mxu0 %v223
      %v340 = vpop.f32.mrb[0].mxu0
      %v341 = vadd.f32 0.0, %v340
      %v342 = vpop.f32.mrb[0].mxu0
      %343 = vmatprep.mubr.f32.mxu0 0.0
      %344 = vmatmul.mubr.f32.gmra.mrb[0].mxu0 %v226
      %v345 = vpop.f32.mrb[0].mxu0
      %v346 = vadd.f32 0.0, %v345
      %v347 = vpop.f32.mrb[0].mxu0
      %348 = vmatprep.mubr.f32.mxu0 0.0
      %349 = vmatmul.mubr.f32.gmra.mrb[0].mxu0 %v229
      %v350 = vpop.f32.mrb[0].mxu0
      %v351 = vadd.f32 0.0, %v350
      %v352 = vpop.f32.mrb[0].mxu0
      %353 = vmatprep.mubr.f32.mxu0 0.0
      %354 = vmatmul.mubr.f32.gmra.mrb[0].mxu0 %v232
      %v355 = vpop.f32.mrb[0].mxu0
      %v356 = vadd.f32 0.0, %v355
      %v357 = vpop.f32.mrb[0].mxu0
      %358 = vdwg.mxu0
      %vm359 = vcmask 261120
      %360 = vst.msk [vmem:[%s181] sm:$0xff] %vm359, %v301
      %361 = vst.msk [vmem:[%s181 + $0x8] sm:$0xff] %vm359, %v306
      %362 = vst.msk [vmem:[%s181 + $0x10] sm:$0xff] %vm359, %v311
      %363 = vst.msk [vmem:[%s181 + $0x18] sm:$0xff] %vm359, %v316
      %364 = vst.msk [vmem:[%s181 + $0x20] sm:$0xff] %vm359, %v321
      %365 = vst.msk [vmem:[%s181 + $0x28] sm:$0xff] %vm359, %v326
      %366 = vst.msk [vmem:[%s181 + $0x30] sm:$0xff] %vm359, %v331
      %367 = vst.msk [vmem:[%s181 + $0x38] sm:$0xff] %vm359, %v336
      %368 = vst.msk [vmem:[%s181 + $0x40] sm:$0xff] %vm359, %v341
      %369 = vst.msk [vmem:[%s181 + $0x48] sm:$0xff] %vm359, %v346
      %370 = vst.msk [vmem:[%s181 + $0x50] sm:$0xff] %vm359, %v351
      %371 = vst.msk [vmem:[%s181 + $0x58] sm:$0xff] %vm359, %v356
      %s372 = smul.u32 12, %s18
      %p373 = scmp.lt.s32.totalorder %s17, 1
      %s374 = scalar_select %p373, %s17, 1
      %p375 = scmp.lt.s32.totalorder %s372, 11
      %s376 = scalar_select %p375, %s372, 11
      %s377 = smul.addr %s374, 12
      %s378 = sadd.s32 %s376, %s377
      %s379 = smul.addr %s378, 8
      %s380 = scalar_lea.vmem %s2, %s379
      // Predicated region
      $region29: #{_pse_head_forward_impl.4} parent=27 // pred_check
        %p381 = pneg %p94
      $region30: #{_pse_head_forward_impl.4} parent=27 // pred_check_branch
        %383 = sbr.rel (%p381) target = $region32
      $region31: #{_pse_head_forward_impl.4} parent=27 // pred_region
        %s384 = smul.u32 12, %s18
      $region32: #{_pse_head_forward_impl.4} parent=27 // pred_fallthru
        _
    $region28: #{_pse_head_forward_impl.4} parent=5 // pred_fallthru
      _
    %p385 = scmp.le.s32.totalorder 2, %s8
    // Predicated region
    $region33: #{_pse_head_forward_impl.4} parent=5 // pred_check
      %p386 = pneg %p385
    $region34: #{_pse_head_forward_impl.4} parent=5 // pred_check_branch
      %388 = sbr.rel (%p386) target = $region36
    $region35: #{_pse_head_forward_impl.4} parent=5 // pred_region
      %s389 = ssub.s32 %s8, 2
      // Predicated region
      $region37: #{_pse_head_forward_impl.4} parent=35 // pred_check
        %p390 = pneg %p100
      $region38: #{_pse_head_forward_impl.4} parent=35 // pred_check_branch
        %392 = sbr.rel (%p390) target = $region40
      $region39: #{_pse_head_forward_impl.4} parent=35 // pred_region
        %s393 = smul.u32 12, %s20
        %p394 = scmp.lt.s32.totalorder %s19, 1
        %s395 = scalar_select %p394, %s19, 1
        %p396 = scmp.lt.s32.totalorder %s393, 11
        %s397 = scalar_select %p396, %s393, 11
        %s398 = smul.addr %s395, 12
        %s399 = sadd.s32 %s397, %s398
        %s400 = smul.addr %s399, 8
        %s401 = scalar_lea.vmem %s2, %s400
      $region40: #{_pse_head_forward_impl.4} parent=35 // pred_fallthru
        _
    $region36: #{_pse_head_forward_impl.4} parent=5 // pred_fallthru
      _
  $region6: #{_pse_head_forward_impl.4} parent=0 // loop_footer
    %s12 = sadd.s32 1, %s8
  $region7: #{_pse_head_forward_impl.4} parent=0 // loop_footer_branch
    %7 = sbr.rel target = $region3
  $region8: #{_pse_head_forward_impl.4} parent=0 // loop_exit
    _

</llo_original>
